<compile_context>
chip_gen: v7x
topology: tpu7x:2x2x1
jax: 0.10.0
libtpu: 0.0.40
codegen_flags: <defaults>
</compile_context>

<pallas_src>
from math import pi as PI, sqrt

import jax
import jax.numpy as jnp
from jax.experimental import pallas as pl
from jax.experimental.pallas import tpu as pltpu

WP = 128  # uniform lane-padded width used for every weight / intermediate


# ----------------------------- Pallas kernel -----------------------------

def spnn_kernel(
    # per-edge streamed inputs
    geo_ref,     # [TE, 8]  f32   (d1, d2, d3, t1, t2, p1, 0, 0)
    gidx_ref,    # [TE, 8]  int32 gather indices pre-offset by t*N in cols 0..3
    didx_ref,    # [1, TE]  int32 destination node index (== N for padded edges)
    # resident small inputs
    const_ref,   # [8, WP]  f32   rows: bc1, bc2, bc3, b_a, b_b, offsets, coeffs, 0
    sel_ref,     # [8, WP]  bf16  0/1 selection matrix geo-col -> smear lane
    xblk_ref,    # [4N, WP] bf16  block-diagonal (x, x, x, x)
    # resident weights (bf16, padded to [WP, WP])
    wA_ref, wB_ref, wc1n_ref, wc1g_ref, wc2_ref, wc3_ref,
    # output accumulator
    out_ref,     # [N, WP]  f32
):
    f32, bf16 = jnp.float32, jnp.bfloat16
    N = out_ref.shape[0]
    TE = geo_ref.shape[0]
    FOURN = xblk_ref.shape[0]

    # Zero the resident accumulator on the first edge tile.
    @pl.when(pl.program_id(0) == 0)
    def _init():
        out_ref[...] = jnp.zeros_like(out_ref)

    def dot(a, b):
        # bf16 MXU operands, f32 accumulation.
        return jnp.dot(a.astype(bf16), b, preferred_element_type=f32)

    relu = lambda v: jnp.maximum(v, 0.0)

    # ---- packed constants (lane-aligned rows) ----
    c = const_ref[...]
    bc1, bc2, bc3 = c[0:1, :], c[1:2, :], c[2:3, :]
    b_a, b_b = c[3:4, :], c[4:5, :]
    off_row, coeff_row = c[5:6, :], c[6:7, :]

    # ---- Gaussian smearing via selection matmul (hi/lo split keeps ~f32 precision) ----
    g = geo_ref[...]                                        # [TE, 8] f32
    g_hi = g.astype(bf16)
    g_lo = (g - g_hi.astype(f32)).astype(bf16)
    sel = sel_ref[...]
    g_rep = (jnp.dot(g_hi, sel, preferred_element_type=f32)
             + jnp.dot(g_lo, sel, preferred_element_type=f32))   # [TE, WP]
    diff = g_rep - off_row
    smear = jnp.exp(coeff_row * diff * diff)                # pad lanes -> exp(0)=1, zero wA rows

    # ---- fused geo-encoding MLPs (block-diagonal stacked weights) ----
    h = relu(dot(smear, wA_ref[...]) + b_a)                 # [TE, WP] (lanes 3H.. = 0)
    geo_all = dot(h, wB_ref[...]) + b_b                     # [TE, WP] geo1|geo2|geo3|0

    # ---- in-kernel node gather: one-hot over 4N rows of block-diag(x) ----
    gi = gidx_ref[...]                                      # [TE, 8] int32
    col = jax.lax.broadcasted_iota(jnp.int32, (TE, FOURN), 1)
    hit = ((col == gi[:, 0:1]) | (col == gi[:, 1:2])
           | (col == gi[:, 2:3]) | (col == gi[:, 3:4]))
    onehot_g = jnp.where(hit, 1.0, 0.0).astype(bf16)        # [TE, 4N]
    na = jnp.dot(onehot_g, xblk_ref[...], preferred_element_type=f32)  # [TE, 4H]

    # ---- combine MLP ----
    c1 = relu(dot(na, wc1n_ref[...]) + dot(geo_all, wc1g_ref[...]) + bc1)
    c2 = relu(dot(c1, wc2_ref[...]) + bc2)
    xe = dot(c2, wc3_ref[...]) + bc3                        # [TE, WP] per-edge messages

    # ---- scatter-add over destination node i (hi/lo bf16 split ~= f32 accuracy) ----
    node_iota = jax.lax.broadcasted_iota(jnp.int32, (N, TE), 0)
    onehot_s = jnp.where(node_iota == didx_ref[...], 1.0, 0.0).astype(bf16)  # [N, TE]
    xe_hi = xe.astype(bf16)
    xe_lo = (xe - xe_hi.astype(f32)).astype(bf16)
    out_ref[...] += (jnp.dot(onehot_s, xe_hi, preferred_element_type=f32)
                     + jnp.dot(onehot_s, xe_lo, preferred_element_type=f32))


# ----------------------------- wrapper / glue -----------------------------

def gaussian_expansion_params(start, stop, num):
    offset = jnp.linspace(start, stop, num, dtype=jnp.float32).reshape(1, num)
    step = (stop - start) / (num - 1)
    coeff = -0.5 / float(step) ** 2
    return offset, coeff


def prepare_kernel_params(raw, num_gaussians, expansions, H):
    """Stack / pad the PyTorch-style parameters into kernel-ready, lane-dense arrays."""
    Gd, Gt, Gp = num_gaussians
    Gtot = 3 * Gd + 2 * Gt + Gp
    assert Gtot <= WP and 4 * H <= WP and 7 * H > 4 * H
    f32, bf16 = jnp.float32, jnp.bfloat16

    def pad2(a, rows=WP, cols=WP):
        return jnp.zeros((rows, cols), a.dtype).at[:a.shape[0], :a.shape[1]].set(a)

    # 0/1 selection matrix: geo column -> replicated smear lanes
    sel = jnp.zeros((8, WP), f32)
    col = 0
    for src, width in ((0, Gd), (1, Gd), (2, Gd), (3, Gt), (4, Gt), (5, Gp)):
        sel = sel.at[src, col:col + width].set(1.0)
        col += width

    # matching offset / coefficient rows
    off_d, coeff_d = expansions["dist"]
    off_t, coeff_t = expansions["theta"]
    off_p, coeff_p = expansions["phi"]
    off_row = jnp.zeros((WP,), f32)
    coeff_row = jnp.zeros((WP,), f32)
    col = 0
    for off, coeff, width in ((off_d, coeff_d, Gd), (off_d, coeff_d, Gd), (off_d, coeff_d, Gd),
                              (off_t, coeff_t, Gt), (off_t, coeff_t, Gt), (off_p, coeff_p, Gp)):
        off_row = off_row.at[col:col + width].set(off.reshape(-1))
        coeff_row = coeff_row.at[col:col + width].set(coeff)
        col += width

    # first geo layer: block-arranged [Gtot, 3H] -> [WP, WP]
    wA = jnp.zeros((WP, WP), f32)
    blocks = [
        (0 * Gd,          raw["w1a"],              0 * H),
        (1 * Gd,          raw["w2a"][:Gd],         1 * H),
        (2 * Gd,          raw["w3a"][:Gd],         2 * H),
        (3 * Gd,          raw["w2a"][Gd:Gd + Gt],  1 * H),
        (3 * Gd + Gt,     raw["w3a"][Gd:Gd + Gt],  2 * H),
        (3 * Gd + 2 * Gt, raw["w3a"][Gd + Gt:],    2 * H),
    ]
    for r0, blk, c0 in blocks:
        wA = wA.at[r0:r0 + blk.shape[0], c0:c0 + blk.shape[1]].set(blk)

    # second geo layer: blockdiag(w1b, w2b, w3b)
    wB = jnp.zeros((WP, WP), f32)
    for t, blk in enumerate((raw["w1b"], raw["w2b"], raw["w3b"])):
        wB = wB.at[t * H:(t + 1) * H, t * H:(t + 1) * H].set(blk)

    wc1 = raw["wc1"]                                  # [7H, 4H]
    params = dict(
        sel=sel.astype(bf16),
        wA=wA.astype(bf16),
        wB=wB.astype(bf16),
        wc1n=pad2(wc1[:4 * H]).astype(bf16),
        wc1g=pad2(wc1[4 * H:]).astype(bf16),          # rows geo1|geo2|geo3
        wc2=pad2(raw["wc2"]).astype(bf16),
        wc3=pad2(raw["wc3"]).astype(bf16),
    )

    # packed constants [8, WP]: biases + offsets + coefficients, one per row
    cp = jnp.zeros((8, WP), f32)
    cp = cp.at[0, :4 * H].set(raw["bc1"].reshape(-1))
    cp = cp.at[1, :2 * H].set(raw["bc2"].reshape(-1))
    cp = cp.at[2, :H].set(raw["bc3"].reshape(-1))
    cp = cp.at[3, :3 * H].set(jnp.concatenate(
        [raw["b1a"].reshape(-1), raw["b2a"].reshape(-1), raw["b3a"].reshape(-1)]))
    cp = cp.at[4, :3 * H].set(jnp.concatenate(
        [raw["b1b"].reshape(-1), raw["b2b"].reshape(-1), raw["b3b"].reshape(-1)]))
    cp = cp.at[5, :].set(off_row)
    cp = cp.at[6, :].set(coeff_row)
    params["const"] = cp
    return params


def spnn_forward(x, distances, thetas, phis, edge_index_3rd, params, *, edge_tile=128):
    i, j, k, p = edge_index_3rd
    N, H = x.shape
    E = i.shape[0]
    f32, bf16, i32 = jnp.float32, jnp.bfloat16, jnp.int32

    # Edge tile (multiple of 128); pad E up with droppable sentinel edges.
    TE = max(128, (int(edge_tile) // 128) * 128)
    E_pad = ((E + TE - 1) // TE) * TE
    pad = E_pad - E

    def pad_e(a, value=0):
        return jnp.pad(a, (0, pad), constant_values=value) if pad else a

    zeros_e = jnp.zeros((E,), f32)
    geo = jnp.stack([distances[1], distances[2], distances[3],
                     thetas[1], thetas[2], phis[1], zeros_e, zeros_e],
                    axis=-1).astype(f32)                                   # [E, 8]
    if pad:
        geo = jnp.pad(geo, ((0, pad), (0, 0)))

    ip = pad_e(i.astype(i32))
    jp = pad_e(j.astype(i32))
    kp = pad_e(k.astype(i32))
    pp = pad_e(p.astype(i32))
    z = jnp.zeros_like(ip)
    gidx = jnp.stack([ip, jp + N, kp + 2 * N, pp + 3 * N, z, z, z, z], axis=-1)  # [E_pad, 8]
    didx = pad_e(i.astype(i32), value=N).reshape(1, E_pad)                       # sentinel N drops

    # Resident block-diagonal node-feature table (pure layout, bf16 like the MXU operand).
    xblk = jnp.zeros((4 * N, WP), bf16)
    xb = x.astype(bf16)
    for t in range(4):
        xblk = xblk.at[t * N:(t + 1) * N, t * H:(t + 1) * H].set(xb)

    grid = (E_pad // TE,)
    const = lambda a: pl.BlockSpec(a.shape, lambda e: (0, 0))              # resident
    in_specs = [
        pl.BlockSpec((TE, 8), lambda e: (e, 0)),                           # geo
        pl.BlockSpec((TE, 8), lambda e: (e, 0)),                           # gather idx
        pl.BlockSpec((1, TE), lambda e: (0, e)),                           # dest idx
        const(params["const"]), const(params["sel"]), const(xblk),
        const(params["wA"]), const(params["wB"]),
        const(params["wc1n"]), const(params["wc1g"]),
        const(params["wc2"]), const(params["wc3"]),
    ]
    out_spec = pl.BlockSpec((N, WP), lambda e: (0, 0))                     # resident accumulator

    # Rough cost estimate for the XLA scheduler.
    flops = 2 * E_pad * (2 * 8 * WP + 4 * N * WP + 6 * WP * WP + 2 * N * WP)
    transcendentals = E_pad * WP
    resident = [params[n] for n in ("const", "sel", "wA", "wB", "wc1n", "wc1g", "wc2", "wc3")]
    bytes_accessed = int(E_pad * (32 + 32 + 4) + xblk.size * 2 + N * WP * 4
                         + sum(a.size * a.dtype.itemsize for a in resident))

    out_padded = pl.pallas_call(
        spnn_kernel,
        out_shape=jax.ShapeDtypeStruct((N, WP), f32),
        grid=grid,
        in_specs=in_specs,
        out_specs=out_spec,
        compiler_params=pltpu.CompilerParams(
            dimension_semantics=("arbitrary",)),       # E axis is a reduction
        cost_estimate=pl.CostEstimate(flops=flops,
                                      transcendentals=transcendentals,
                                      bytes_accessed=bytes_accessed),
    )(geo, gidx, didx, params["const"], params["sel"], xblk,
      params["wA"], params["wB"], params["wc1n"], params["wc1g"],
      params["wc2"], params["wc3"])

    return out_padded[:, :H]


# ----------------------------- pure-JAX reference -----------------------------
# Mirrors the kernel's bf16-MXU / f32-accumulate numerics so tolerances stay tight.

def spnn_reference(x, distances, thetas, phis, edge_index_3rd, raw, expansions):
    i, j, k, p = edge_index_3rd
    N, H = x.shape
    bf16, f32 = jnp.bfloat16, jnp.float32

    def bdot(a, w):
        return jnp.dot(a.astype(bf16), w.astype(bf16), preferred_element_type=f32)

    def smear(v, key):
        off, coeff = expansions[key]
        d = v.reshape(-1, 1) - off
        return jnp.exp(coeff * d * d)

    def mlp2(z, wa, ba, wb, bb):
        h = jnp.maximum(bdot(z, wa) + ba, 0.0)
        return bdot(h, wb) + bb

    geo1 = mlp2(smear(distances[1], "dist"),
                raw["w1a"], raw["b1a"], raw["w1b"], raw["b1b"])
    geo2 = mlp2(jnp.concatenate([smear(distances[2], "dist"),
                                 smear(thetas[1], "theta")], -1),
                raw["w2a"], raw["b2a"], raw["w2b"], raw["b2b"])
    geo3 = mlp2(jnp.concatenate([smear(distances[3], "dist"),
                                 smear(thetas[2], "theta"),
                                 smear(phis[1], "phi")], -1),
                raw["w3a"], raw["b3a"], raw["w3b"], raw["b3b"])

    xb = x.astype(bf16).astype(f32)   # kernel holds x in bf16 (exact gather of bf16 values)
    cat = jnp.concatenate([xb[i], xb[j], xb[k], xb[p], geo1, geo2, geo3], -1)
    h = jnp.maximum(bdot(cat, raw["wc1"]) + raw["bc1"], 0.0)
    h = jnp.maximum(bdot(h, raw["wc2"]) + raw["bc2"], 0.0)
    xe = bdot(h, raw["wc3"]) + raw["bc3"]
    return jax.ops.segment_sum(xe, i, num_segments=N)


# ----------------------------- main -----------------------------

if __name__ == "__main__":
    key = jax.random.PRNGKey(0)

    H = 32                       # hidden_channels
    N = 16                       # number of nodes
    E = 300                      # number of 3rd-order edges (exercises edge padding)
    NG = (16, 8, 8)              # num_gaussians for (distance, theta, phi)

    expansions = {
        "dist":  gaussian_expansion_params(0.0, 5.0, NG[0]),
        "theta": gaussian_expansion_params(0.0, PI, NG[1]),
        "phi":   gaussian_expansion_params(-PI, PI, NG[2]),
    }

    def xavier(kk, fan_in, fan_out):
        bound = sqrt(6.0 / (fan_in + fan_out))
        return jax.random.uniform(kk, (fan_in, fan_out), jnp.float32, -bound, bound)

    keys = jax.random.split(key, 24)
    small = lambda kk, n: 0.1 * jax.random.normal(kk, (1, n), jnp.float32)

    raw = {
        "w1a": xavier(keys[0], NG[0], H),                     "b1a": small(keys[10], H),
        "w1b": xavier(keys[1], H, H),                         "b1b": small(keys[11], H),
        "w2a": xavier(keys[2], NG[0] + NG[1], H),             "b2a": small(keys[12], H),
        "w2b": xavier(keys[3], H, H),                         "b2b": small(keys[13], H),
        "w3a": xavier(keys[4], NG[0] + NG[1] + NG[2], H),     "b3a": small(keys[14], H),
        "w3b": xavier(keys[5], H, H),                         "b3b": small(keys[15], H),
        "wc1": xavier(keys[6], 7 * H, 4 * H),                 "bc1": small(keys[16], 4 * H),
        "wc2": xavier(keys[7], 4 * H, 2 * H),                 "bc2": small(keys[17], 2 * H),
        "wc3": xavier(keys[8], 2 * H, H),                     "bc3": small(keys[18], H),
    }

    dkeys = jax.random.split(keys[9], 12)
    x = jax.random.normal(dkeys[0], (N, H), jnp.float32)
    distances = {1: jax.random.uniform(dkeys[1], (E,), jnp.float32, 0.0, 5.0),
                 2: jax.random.uniform(dkeys[2], (E,), jnp.float32, 0.0, 5.0),
                 3: jax.random.uniform(dkeys[3], (E,), jnp.float32, 0.0, 5.0)}
    thetas = {1: jax.random.uniform(dkeys[4], (E,), jnp.float32, 0.0, PI),
              2: jax.random.uniform(dkeys[5], (E,), jnp.float32, 0.0, PI)}
    phis = {1: jax.random.uniform(dkeys[6], (E,), jnp.float32, -PI, PI)}
    edge_index_3rd = tuple(
        jax.random.randint(dkeys[7 + t], (E,), 0, N, jnp.int32) for t in range(4))

    params = prepare_kernel_params(raw, NG, expansions, H)

    out = spnn_forward(x, distances, thetas, phis, edge_index_3rd, params, edge_tile=128)
    out = jax.block_until_ready(out)

    ref = spnn_reference(x, distances, thetas, phis, edge_index_3rd, raw, expansions)
    assert out.shape == (N, H)
    err = float(jnp.max(jnp.abs(out - ref)))
    assert jnp.allclose(out, ref, atol=2e-2, rtol=2e-2), f"max abs err {err}"

    print("KERNEL_OK")
</pallas_src>

<mosaic_0001>
module attributes {stable_mosaic.version = 11 : i64} {
  func.func @spnn_kernel(%arg0: i32, %arg1: memref<128x8xf32, #tpu.memory_space<vmem>>, %arg2: memref<128x8xi32, #tpu.memory_space<vmem>>, %arg3: memref<1x128xi32, #tpu.memory_space<vmem>>, %arg4: memref<8x128xf32, #tpu.memory_space<vmem>>, %arg5: memref<8x128xbf16, #tpu.memory_space<vmem>>, %arg6: memref<64x128xbf16, #tpu.memory_space<vmem>>, %arg7: memref<128x128xbf16, #tpu.memory_space<vmem>>, %arg8: memref<128x128xbf16, #tpu.memory_space<vmem>>, %arg9: memref<128x128xbf16, #tpu.memory_space<vmem>>, %arg10: memref<128x128xbf16, #tpu.memory_space<vmem>>, %arg11: memref<128x128xbf16, #tpu.memory_space<vmem>>, %arg12: memref<128x128xbf16, #tpu.memory_space<vmem>>, %arg13: memref<16x128xf32, #tpu.memory_space<vmem>>) attributes {dimension_semantics = [#tpu.dimension_semantics<arbitrary>], iteration_bounds = array<i64: 3>, scalar_prefetch = 0 : i64, scratch_operands = 0 : i64, tpu.core_type = #tpu.core_type<tc>, window_params = [{transform_indices = @transform_0, window_bounds = array<i64: 128, 8>}, {transform_indices = @transform_1, window_bounds = array<i64: 128, 8>}, {transform_indices = @transform_2, window_bounds = array<i64: 1, 128>}, {pipeline_mode = #tpu.pipeline_mode<synchronous>, transform_indices = @transform_3, window_bounds = array<i64: 8, 128>}, {pipeline_mode = #tpu.pipeline_mode<synchronous>, transform_indices = @transform_4, window_bounds = array<i64: 8, 128>}, {pipeline_mode = #tpu.pipeline_mode<synchronous>, transform_indices = @transform_5, window_bounds = array<i64: 64, 128>}, {pipeline_mode = #tpu.pipeline_mode<synchronous>, transform_indices = @transform_6, window_bounds = array<i64: 128, 128>}, {pipeline_mode = #tpu.pipeline_mode<synchronous>, transform_indices = @transform_7, window_bounds = array<i64: 128, 128>}, {pipeline_mode = #tpu.pipeline_mode<synchronous>, transform_indices = @transform_8, window_bounds = array<i64: 128, 128>}, {pipeline_mode = #tpu.pipeline_mode<synchronous>, transform_indices = @transform_9, window_bounds = array<i64: 128, 128>}, {pipeline_mode = #tpu.pipeline_mode<synchronous>, transform_indices = @transform_10, window_bounds = array<i64: 128, 128>}, {pipeline_mode = #tpu.pipeline_mode<synchronous>, transform_indices = @transform_11, window_bounds = array<i64: 128, 128>}, {pipeline_mode = #tpu.pipeline_mode<synchronous>, transform_indices = @transform_12, window_bounds = array<i64: 16, 128>}]} {
    %c0_i32 = arith.constant 0 : i32
    %0 = arith.cmpi eq, %arg0, %c0_i32 : i32
    %1 = arith.extui %0 : i1 to i32
    %c0_i32_0 = arith.constant 0 : i32
    %2 = arith.cmpi ne, %1, %c0_i32_0 : i32
    scf.if %2 {
      %cst_45 = arith.constant 0.000000e+00 : f32
      %102 = vector.broadcast %cst_45 : f32 to vector<16x128xf32>
      %c0_46 = arith.constant 0 : index
      %c0_47 = arith.constant 0 : index
      %103 = vector.load %arg13[%c0_46, %c0_47] : memref<16x128xf32, #tpu.memory_space<vmem>>, vector<16x128xf32>
      tpu.vector_store %arg13[%c0_46, %c0_47], %102 {strides = array<i32>} : memref<16x128xf32, #tpu.memory_space<vmem>>, vector<16x128xf32>,
    } else {
    }
    %c0 = arith.constant 0 : index
    %c0_1 = arith.constant 0 : index
    %3 = vector.load %arg4[%c0, %c0_1] : memref<8x128xf32, #tpu.memory_space<vmem>>, vector<8x128xf32>
    %4 = vector.extract_strided_slice %3 {offsets = [0, 0], sizes = [1, 128], strides = [1, 1]} : vector<8x128xf32> to vector<1x128xf32>
    %5 = vector.extract_strided_slice %3 {offsets = [1, 0], sizes = [1, 128], strides = [1, 1]} : vector<8x128xf32> to vector<1x128xf32>
    %6 = vector.extract_strided_slice %3 {offsets = [2, 0], sizes = [1, 128], strides = [1, 1]} : vector<8x128xf32> to vector<1x128xf32>
    %7 = vector.extract_strided_slice %3 {offsets = [3, 0], sizes = [1, 128], strides = [1, 1]} : vector<8x128xf32> to vector<1x128xf32>
    %8 = vector.extract_strided_slice %3 {offsets = [4, 0], sizes = [1, 128], strides = [1, 1]} : vector<8x128xf32> to vector<1x128xf32>
    %9 = vector.extract_strided_slice %3 {offsets = [5, 0], sizes = [1, 128], strides = [1, 1]} : vector<8x128xf32> to vector<1x128xf32>
    %10 = vector.extract_strided_slice %3 {offsets = [6, 0], sizes = [1, 128], strides = [1, 1]} : vector<8x128xf32> to vector<1x128xf32>
    %c0_2 = arith.constant 0 : index
    %c0_3 = arith.constant 0 : index
    %11 = vector.load %arg1[%c0_2, %c0_3] : memref<128x8xf32, #tpu.memory_space<vmem>>, vector<128x8xf32>
    %12 = arith.truncf %11 : vector<128x8xf32> to vector<128x8xbf16>
    %13 = arith.extf %12 : vector<128x8xbf16> to vector<128x8xf32>
    %14 = arith.subf %11, %13 : vector<128x8xf32>
    %15 = arith.truncf %14 : vector<128x8xf32> to vector<128x8xbf16>
    %c0_4 = arith.constant 0 : index
    %c0_5 = arith.constant 0 : index
    %16 = vector.load %arg5[%c0_4, %c0_5] : memref<8x128xbf16, #tpu.memory_space<vmem>>, vector<8x128xbf16>
    %cst = arith.constant dense<0.000000e+00> : vector<128x128xf32>
    %17 = tpu.matmul %12, %16, %cst {dimension_numbers = #tpu.dot_dimension_numbers<[1], [0], [0], [1], [0, 0, 1, 1], [], []>} : vector<128x8xbf16>, vector<8x128xbf16>, vector<128x128xf32> -> vector<128x128xf32>
    %cst_6 = arith.constant dense<0.000000e+00> : vector<128x128xf32>
    %18 = tpu.matmul %15, %16, %cst_6 {dimension_numbers = #tpu.dot_dimension_numbers<[1], [0], [0], [1], [0, 0, 1, 1], [], []>} : vector<128x8xbf16>, vector<8x128xbf16>, vector<128x128xf32> -> vector<128x128xf32>
    %19 = arith.addf %17, %18 : vector<128x128xf32>
    %20 = vector.broadcast %9 : vector<1x128xf32> to vector<128x128xf32>
    %21 = arith.subf %19, %20 : vector<128x128xf32>
    %22 = vector.broadcast %10 : vector<1x128xf32> to vector<128x128xf32>
    %23 = arith.mulf %22, %21 : vector<128x128xf32>
    %24 = arith.mulf %23, %21 : vector<128x128xf32>
    %25 = math.exp %24 : vector<128x128xf32>
    %c0_7 = arith.constant 0 : index
    %c0_8 = arith.constant 0 : index
    %26 = vector.load %arg7[%c0_7, %c0_8] : memref<128x128xbf16, #tpu.memory_space<vmem>>, vector<128x128xbf16>
    %27 = arith.truncf %25 : vector<128x128xf32> to vector<128x128xbf16>
    %cst_9 = arith.constant dense<0.000000e+00> : vector<128x128xf32>
    %28 = tpu.matmul %27, %26, %cst_9 {dimension_numbers = #tpu.dot_dimension_numbers<[1], [0], [0], [1], [0, 0, 1, 1], [], []>} : vector<128x128xbf16>, vector<128x128xbf16>, vector<128x128xf32> -> vector<128x128xf32>
    %29 = vector.broadcast %7 : vector<1x128xf32> to vector<128x128xf32>
    %30 = arith.addf %28, %29 : vector<128x128xf32>
    %cst_10 = arith.constant 0.000000e+00 : f32
    %31 = vector.broadcast %cst_10 : f32 to vector<128x128xf32>
    %32 = arith.maximumf %30, %31 : vector<128x128xf32>
    %c0_11 = arith.constant 0 : index
    %c0_12 = arith.constant 0 : index
    %33 = vector.load %arg8[%c0_11, %c0_12] : memref<128x128xbf16, #tpu.memory_space<vmem>>, vector<128x128xbf16>
    %34 = arith.truncf %32 : vector<128x128xf32> to vector<128x128xbf16>
    %cst_13 = arith.constant dense<0.000000e+00> : vector<128x128xf32>
    %35 = tpu.matmul %34, %33, %cst_13 {dimension_numbers = #tpu.dot_dimension_numbers<[1], [0], [0], [1], [0, 0, 1, 1], [], []>} : vector<128x128xbf16>, vector<128x128xbf16>, vector<128x128xf32> -> vector<128x128xf32>
    %36 = vector.broadcast %8 : vector<1x128xf32> to vector<128x128xf32>
    %37 = arith.addf %35, %36 : vector<128x128xf32>
    %c0_14 = arith.constant 0 : index
    %c0_15 = arith.constant 0 : index
    %38 = vector.load %arg2[%c0_14, %c0_15] : memref<128x8xi32, #tpu.memory_space<vmem>>, vector<128x8xi32>
    %39 = tpu.iota {dimensions = array<i32: 1>} : vector<128x64xi32>
    %40 = vector.extract_strided_slice %38 {offsets = [0, 0], sizes = [128, 1], strides = [1, 1]} : vector<128x8xi32> to vector<128x1xi32>
    %41 = vector.broadcast %40 : vector<128x1xi32> to vector<128x64xi32>
    %42 = arith.cmpi eq, %39, %41 : vector<128x64xi32>
    %43 = vector.extract_strided_slice %38 {offsets = [0, 1], sizes = [128, 1], strides = [1, 1]} : vector<128x8xi32> to vector<128x1xi32>
    %44 = vector.broadcast %43 : vector<128x1xi32> to vector<128x64xi32>
    %45 = arith.cmpi eq, %39, %44 : vector<128x64xi32>
    %46 = arith.ori %42, %45 : vector<128x64xi1>
    %47 = vector.extract_strided_slice %38 {offsets = [0, 2], sizes = [128, 1], strides = [1, 1]} : vector<128x8xi32> to vector<128x1xi32>
    %48 = vector.broadcast %47 : vector<128x1xi32> to vector<128x64xi32>
    %49 = arith.cmpi eq, %39, %48 : vector<128x64xi32>
    %50 = arith.ori %46, %49 : vector<128x64xi1>
    %51 = vector.extract_strided_slice %38 {offsets = [0, 3], sizes = [128, 1], strides = [1, 1]} : vector<128x8xi32> to vector<128x1xi32>
    %52 = vector.broadcast %51 : vector<128x1xi32> to vector<128x64xi32>
    %53 = arith.cmpi eq, %39, %52 : vector<128x64xi32>
    %54 = arith.ori %50, %53 : vector<128x64xi1>
    %cst_16 = arith.constant 1.000000e+00 : f32
    %cst_17 = arith.constant 0.000000e+00 : f32
    %55 = vector.broadcast %cst_16 : f32 to vector<128x64xf32>
    %56 = vector.broadcast %cst_17 : f32 to vector<128x64xf32>
    %57 = arith.select %54, %55, %56 : vector<128x64xi1>, vector<128x64xf32>
    %58 = arith.truncf %57 : vector<128x64xf32> to vector<128x64xbf16>
    %c0_18 = arith.constant 0 : index
    %c0_19 = arith.constant 0 : index
    %59 = vector.load %arg6[%c0_18, %c0_19] : memref<64x128xbf16, #tpu.memory_space<vmem>>, vector<64x128xbf16>
    %cst_20 = arith.constant dense<0.000000e+00> : vector<128x128xf32>
    %60 = tpu.matmul %58, %59, %cst_20 {dimension_numbers = #tpu.dot_dimension_numbers<[1], [0], [0], [1], [0, 0, 1, 1], [], []>} : vector<128x64xbf16>, vector<64x128xbf16>, vector<128x128xf32> -> vector<128x128xf32>
    %c0_21 = arith.constant 0 : index
    %c0_22 = arith.constant 0 : index
    %61 = vector.load %arg9[%c0_21, %c0_22] : memref<128x128xbf16, #tpu.memory_space<vmem>>, vector<128x128xbf16>
    %62 = arith.truncf %60 : vector<128x128xf32> to vector<128x128xbf16>
    %cst_23 = arith.constant dense<0.000000e+00> : vector<128x128xf32>
    %63 = tpu.matmul %62, %61, %cst_23 {dimension_numbers = #tpu.dot_dimension_numbers<[1], [0], [0], [1], [0, 0, 1, 1], [], []>} : vector<128x128xbf16>, vector<128x128xbf16>, vector<128x128xf32> -> vector<128x128xf32>
    %c0_24 = arith.constant 0 : index
    %c0_25 = arith.constant 0 : index
    %64 = vector.load %arg10[%c0_24, %c0_25] : memref<128x128xbf16, #tpu.memory_space<vmem>>, vector<128x128xbf16>
    %65 = arith.truncf %37 : vector<128x128xf32> to vector<128x128xbf16>
    %cst_26 = arith.constant dense<0.000000e+00> : vector<128x128xf32>
    %66 = tpu.matmul %65, %64, %cst_26 {dimension_numbers = #tpu.dot_dimension_numbers<[1], [0], [0], [1], [0, 0, 1, 1], [], []>} : vector<128x128xbf16>, vector<128x128xbf16>, vector<128x128xf32> -> vector<128x128xf32>
    %67 = arith.addf %63, %66 : vector<128x128xf32>
    %68 = vector.broadcast %4 : vector<1x128xf32> to vector<128x128xf32>
    %69 = arith.addf %67, %68 : vector<128x128xf32>
    %cst_27 = arith.constant 0.000000e+00 : f32
    %70 = vector.broadcast %cst_27 : f32 to vector<128x128xf32>
    %71 = arith.maximumf %69, %70 : vector<128x128xf32>
    %c0_28 = arith.constant 0 : index
    %c0_29 = arith.constant 0 : index
    %72 = vector.load %arg11[%c0_28, %c0_29] : memref<128x128xbf16, #tpu.memory_space<vmem>>, vector<128x128xbf16>
    %73 = arith.truncf %71 : vector<128x128xf32> to vector<128x128xbf16>
    %cst_30 = arith.constant dense<0.000000e+00> : vector<128x128xf32>
    %74 = tpu.matmul %73, %72, %cst_30 {dimension_numbers = #tpu.dot_dimension_numbers<[1], [0], [0], [1], [0, 0, 1, 1], [], []>} : vector<128x128xbf16>, vector<128x128xbf16>, vector<128x128xf32> -> vector<128x128xf32>
    %75 = vector.broadcast %5 : vector<1x128xf32> to vector<128x128xf32>
    %76 = arith.addf %74, %75 : vector<128x128xf32>
    %cst_31 = arith.constant 0.000000e+00 : f32
    %77 = vector.broadcast %cst_31 : f32 to vector<128x128xf32>
    %78 = arith.maximumf %76, %77 : vector<128x128xf32>
    %c0_32 = arith.constant 0 : index
    %c0_33 = arith.constant 0 : index
    %79 = vector.load %arg12[%c0_32, %c0_33] : memref<128x128xbf16, #tpu.memory_space<vmem>>, vector<128x128xbf16>
    %80 = arith.truncf %78 : vector<128x128xf32> to vector<128x128xbf16>
    %cst_34 = arith.constant dense<0.000000e+00> : vector<128x128xf32>
    %81 = tpu.matmul %80, %79, %cst_34 {dimension_numbers = #tpu.dot_dimension_numbers<[1], [0], [0], [1], [0, 0, 1, 1], [], []>} : vector<128x128xbf16>, vector<128x128xbf16>, vector<128x128xf32> -> vector<128x128xf32>
    %82 = vector.broadcast %6 : vector<1x128xf32> to vector<128x128xf32>
    %83 = arith.addf %81, %82 : vector<128x128xf32>
    %84 = tpu.iota {dimensions = array<i32: 0>} : vector<16x128xi32>
    %c0_35 = arith.constant 0 : index
    %c0_36 = arith.constant 0 : index
    %85 = vector.load %arg3[%c0_35, %c0_36] : memref<1x128xi32, #tpu.memory_space<vmem>>, vector<1x128xi32>
    %86 = vector.broadcast %85 : vector<1x128xi32> to vector<16x128xi32>
    %87 = arith.cmpi eq, %84, %86 : vector<16x128xi32>
    %cst_37 = arith.constant 1.000000e+00 : f32
    %cst_38 = arith.constant 0.000000e+00 : f32
    %88 = vector.broadcast %cst_37 : f32 to vector<16x128xf32>
    %89 = vector.broadcast %cst_38 : f32 to vector<16x128xf32>
    %90 = arith.select %87, %88, %89 : vector<16x128xi1>, vector<16x128xf32>
    %91 = arith.truncf %90 : vector<16x128xf32> to vector<16x128xbf16>
    %92 = arith.truncf %83 : vector<128x128xf32> to vector<128x128xbf16>
    %93 = arith.extf %92 : vector<128x128xbf16> to vector<128x128xf32>
    %94 = arith.subf %83, %93 : vector<128x128xf32>
    %95 = arith.truncf %94 : vector<128x128xf32> to vector<128x128xbf16>
    %c0_39 = arith.constant 0 : index
    %c0_40 = arith.constant 0 : index
    %96 = vector.load %arg13[%c0_39, %c0_40] : memref<16x128xf32, #tpu.memory_space<vmem>>, vector<16x128xf32>
    %cst_41 = arith.constant dense<0.000000e+00> : vector<16x128xf32>
    %97 = tpu.matmul %91, %92, %cst_41 {dimension_numbers = #tpu.dot_dimension_numbers<[1], [0], [0], [1], [0, 0, 1, 1], [], []>} : vector<16x128xbf16>, vector<128x128xbf16>, vector<16x128xf32> -> vector<16x128xf32>
    %cst_42 = arith.constant dense<0.000000e+00> : vector<16x128xf32>
    %98 = tpu.matmul %91, %95, %cst_42 {dimension_numbers = #tpu.dot_dimension_numbers<[1], [0], [0], [1], [0, 0, 1, 1], [], []>} : vector<16x128xbf16>, vector<128x128xbf16>, vector<16x128xf32> -> vector<16x128xf32>
    %99 = arith.addf %97, %98 : vector<16x128xf32>
    %100 = arith.addf %96, %99 : vector<16x128xf32>
    %c0_43 = arith.constant 0 : index
    %c0_44 = arith.constant 0 : index
    %101 = vector.load %arg13[%c0_43, %c0_44] : memref<16x128xf32, #tpu.memory_space<vmem>>, vector<16x128xf32>
    tpu.vector_store %arg13[%c0_43, %c0_44], %100 {strides = array<i32>} : memref<16x128xf32, #tpu.memory_space<vmem>>, vector<16x128xf32>,
    return
  }
  func.func @transform_0(%arg0: i32) -> (i32, i32) {
    %c0_i32 = arith.constant 0 : i32
    %c0_i32_0 = arith.constant 0 : i32
    return %arg0, %c0_i32 : i32, i32
  }
  func.func @transform_1(%arg0: i32) -> (i32, i32) {
    %c0_i32 = arith.constant 0 : i32
    %c0_i32_0 = arith.constant 0 : i32
    return %arg0, %c0_i32 : i32, i32
  }
  func.func @transform_2(%arg0: i32) -> (i32, i32) {
    %c0_i32 = arith.constant 0 : i32
    %c0_i32_0 = arith.constant 0 : i32
    return %c0_i32, %arg0 : i32, i32
  }
  func.func @transform_3(%arg0: i32) -> (i32, i32) {
    %c0_i32 = arith.constant 0 : i32
    %c0_i32_0 = arith.constant 0 : i32
    %c0_i32_1 = arith.constant 0 : i32
    return %c0_i32, %c0_i32_0 : i32, i32
  }
  func.func @transform_4(%arg0: i32) -> (i32, i32) {
    %c0_i32 = arith.constant 0 : i32
    %c0_i32_0 = arith.constant 0 : i32
    %c0_i32_1 = arith.constant 0 : i32
    return %c0_i32, %c0_i32_0 : i32, i32
  }
  func.func @transform_5(%arg0: i32) -> (i32, i32) {
    %c0_i32 = arith.constant 0 : i32
    %c0_i32_0 = arith.constant 0 : i32
    %c0_i32_1 = arith.constant 0 : i32
    return %c0_i32, %c0_i32_0 : i32, i32
  }
  func.func @transform_6(%arg0: i32) -> (i32, i32) {
    %c0_i32 = arith.constant 0 : i32
    %c0_i32_0 = arith.constant 0 : i32
    %c0_i32_1 = arith.constant 0 : i32
    return %c0_i32, %c0_i32_0 : i32, i32
  }
  func.func @transform_7(%arg0: i32) -> (i32, i32) {
    %c0_i32 = arith.constant 0 : i32
    %c0_i32_0 = arith.constant 0 : i32
    %c0_i32_1 = arith.constant 0 : i32
    return %c0_i32, %c0_i32_0 : i32, i32
  }
  func.func @transform_8(%arg0: i32) -> (i32, i32) {
    %c0_i32 = arith.constant 0 : i32
    %c0_i32_0 = arith.constant 0 : i32
    %c0_i32_1 = arith.constant 0 : i32
    return %c0_i32, %c0_i32_0 : i32, i32
  }
  func.func @transform_9(%arg0: i32) -> (i32, i32) {
    %c0_i32 = arith.constant 0 : i32
    %c0_i32_0 = arith.constant 0 : i32
    %c0_i32_1 = arith.constant 0 : i32
    return %c0_i32, %c0_i32_0 : i32, i32
  }
  func.func @transform_10(%arg0: i32) -> (i32, i32) {
    %c0_i32 = arith.constant 0 : i32
    %c0_i32_0 = arith.constant 0 : i32
    %c0_i32_1 = arith.constant 0 : i32
    return %c0_i32, %c0_i32_0 : i32, i32
  }
  func.func @transform_11(%arg0: i32) -> (i32, i32) {
    %c0_i32 = arith.constant 0 : i32
    %c0_i32_0 = arith.constant 0 : i32
    %c0_i32_1 = arith.constant 0 : i32
    return %c0_i32, %c0_i32_0 : i32, i32
  }
  func.func @transform_12(%arg0: i32) -> (i32, i32) {
    %c0_i32 = arith.constant 0 : i32
    %c0_i32_0 = arith.constant 0 : i32
    %c0_i32_1 = arith.constant 0 : i32
    return %c0_i32, %c0_i32_0 : i32, i32
  }
}

</mosaic_0001>

<llo_original>
// kernel: tpu_custom_call.1
$region0: #{tpu_custom_call.1}
  #allocation0 [shape = 'u32[]', space=smem, size = 0x4, offset = 0x4, fixed_abs, tag = 'smem constant byte address 0x4 - core index']
  #allocation1 [shape = 'u32[144,128]{1,0:T(1,128)}', space=vmem, size = 0x12000, scoped, tag = 'internal scratch']
  %s0 = inlined_call_operand.vmem [shape: f32[384,8], index: 0, kind: input, shape index: {}]
  %s1 = inlined_call_operand.vmem [shape: s32[384,8], index: 1, kind: input, shape index: {}]
  %s2 = inlined_call_operand.vmem [shape: s32[1,384], index: 2, kind: input, shape index: {}]
  %s3 = inlined_call_operand.vmem [shape: f32[8,128], index: 3, kind: input, shape index: {}]
  %s4 = inlined_call_operand.vmem [shape: bf16[8,128], index: 4, kind: input, shape index: {}]
  %s5 = inlined_call_operand.vmem [shape: bf16[64,128], index: 5, kind: input, shape index: {}]
  %s6 = inlined_call_operand.vmem [shape: bf16[128,128], index: 6, kind: input, shape index: {}]
  %s7 = inlined_call_operand.vmem [shape: bf16[128,128], index: 7, kind: input, shape index: {}]
  %s8 = inlined_call_operand.vmem [shape: bf16[128,128], index: 8, kind: input, shape index: {}]
  %s9 = inlined_call_operand.vmem [shape: bf16[128,128], index: 9, kind: input, shape index: {}]
  %s10 = inlined_call_operand.vmem [shape: bf16[128,128], index: 10, kind: input, shape index: {}]
  %s11 = inlined_call_operand.vmem [shape: bf16[128,128], index: 11, kind: input, shape index: {}]
  %s12 = inlined_call_operand.hbm [shape: f32[16,128], index: 12, kind: output, shape index: {}]
  %s13 = sld [smem:[#allocation0]]
  $region85: #{tpu_custom_call.1} parent=0
    _
  %s15 = ssub.s32 1, %s13
  %s16 = scalar_select 0, %s15, %s13
  $region1: #{tpu_custom_call.1} parent=0
    #allocation2 [shape = 'u8[8192]{0}', space=vmem, size = 0x2000, scoped, tag = 'output window, operand 0, single buffered']
    #allocation3 [shape = 's32[2]{0}', space=sflag, size = 0x8, scoped, tag = 'scoped memory for tpu_custom_call.1']
    %17 = vsyncpa [#allocation3], 0
    loop: start=0, step=1, limit=5
    $region2: #{tpu_custom_call.1} parent=1 // loop_pre_header
      _
    $region3: #{tpu_custom_call.1} parent=1 // loop_header
      %s19 = sphi 0, %s23
      %p20 = scmp.ge.s32.totalorder %s19, 5
      %s29 = sphi 0, %s31
      %s32 = sphi 0, %s29
      %s33 = sphi 0, %s32
      %s49 = sphi 0, %s33
      %s55 = sphi 0, %s57
      %s58 = sphi 0, %s55
      %s59 = sphi 0, %s58
      %s75 = sphi 0, %s59
      %s81 = sphi 0, %s83
      %s84 = sphi 0, %s81
      %s85 = sphi 0, %s84
      %s101 = sphi 0, %s85
      %s105 = sphi 0, %s105
      %s107 = sphi 0, %s105
      %s108 = sphi 0, %s107
      %s122 = sphi 0, %s108
      %s126 = sphi 0, %s126
      %s128 = sphi 0, %s126
      %s129 = sphi 0, %s128
      %s143 = sphi 0, %s129
      %s147 = sphi 0, %s147
      %s149 = sphi 0, %s147
      %s150 = sphi 0, %s149
      %s164 = sphi 0, %s150
      %s168 = sphi 0, %s168
      %s170 = sphi 0, %s168
      %s171 = sphi 0, %s170
      %s185 = sphi 0, %s171
      %s189 = sphi 0, %s189
      %s191 = sphi 0, %s189
      %s192 = sphi 0, %s191
      %s206 = sphi 0, %s192
      %s210 = sphi 0, %s210
      %s212 = sphi 0, %s210
      %s213 = sphi 0, %s212
      %s227 = sphi 0, %s213
      %s231 = sphi 0, %s231
      %s233 = sphi 0, %s231
      %s234 = sphi 0, %s233
      %s248 = sphi 0, %s234
      %s252 = sphi 0, %s252
      %s254 = sphi 0, %s252
      %s255 = sphi 0, %s254
      %s269 = sphi 0, %s255
      %s273 = sphi 0, %s273
      %s275 = sphi 0, %s273
      %s276 = sphi 0, %s275
      %s290 = sphi 0, %s276
      %s294 = sphi 0, %s294
      %s296 = sphi 0, %s294
      %s297 = sphi 0, %s296
      %s311 = sphi 0, %s297
    $region4: #{tpu_custom_call.1} parent=1 // loop_header_branch
      %22 = sbr.rel (%p20) target = $region8
    $region5: #{tpu_custom_call.1} parent=1 // loop_body
      %s24 = ssub.s32 %s19, 1
      %s25 = ssub.s32 %s19, 2
      %s26 = sadd.s32 %s19, 1
      %s27 = ssub.s32 %s19, %s26
      %p28 = scmp.eq.s32.totalorder %s27, 0
      %s30 = sadd.s32 %s29, 1
      %s31 = scalar_select %p28, %s29, %s30
      %p34 = pneg %p28
      %p35 = scmp.eq.s32.totalorder %s19, 2
      %p36 = por %p34, %p35
      %p37 = scmp.ne.s32.totalorder %s29, %s32
      %p38 = scmp.eq.s32.totalorder %s19, 0
      %p39 = por %p37, %p38
      %p40 = scmp.ne.s32.totalorder %s29, %s32
      %p41 = scmp.eq.s32.totalorder %s24, 2
      %p42 = por %p40, %p41
      %p43 = scmp.ne.s32.totalorder %s32, %s33
      %p44 = scmp.eq.s32.totalorder %s24, 0
      %p45 = por %p43, %p44
      %p46 = scmp.ne.s32.totalorder %s32, %s33
      %p47 = scmp.eq.s32.totalorder %s25, 2
      %p48 = por %p46, %p47
      %p50 = scmp.ne.s32.totalorder %s33, %s49
      %p51 = scmp.eq.s32.totalorder %s25, 0
      %p52 = por %p50, %p51
      %s53 = ssub.s32 %s19, %s26
      %p54 = scmp.eq.s32.totalorder %s53, 0
      %s56 = sadd.s32 %s55, 1
      %s57 = scalar_select %p54, %s55, %s56
      %p60 = pneg %p54
      %p61 = scmp.eq.s32.totalorder %s19, 2
      %p62 = por %p60, %p61
      %p63 = scmp.ne.s32.totalorder %s55, %s58
      %p64 = scmp.eq.s32.totalorder %s19, 0
      %p65 = por %p63, %p64
      %p66 = scmp.ne.s32.totalorder %s55, %s58
      %p67 = scmp.eq.s32.totalorder %s24, 2
      %p68 = por %p66, %p67
      %p69 = scmp.ne.s32.totalorder %s58, %s59
      %p70 = scmp.eq.s32.totalorder %s24, 0
      %p71 = por %p69, %p70
      %p72 = scmp.ne.s32.totalorder %s58, %s59
      %p73 = scmp.eq.s32.totalorder %s25, 2
      %p74 = por %p72, %p73
      %p76 = scmp.ne.s32.totalorder %s59, %s75
      %p77 = scmp.eq.s32.totalorder %s25, 0
      %p78 = por %p76, %p77
      %s79 = ssub.s32 %s19, %s26
      %p80 = scmp.eq.s32.totalorder %s79, 0
      %s82 = sadd.s32 %s81, 1
      %s83 = scalar_select %p80, %s81, %s82
      %p86 = pneg %p80
      %p87 = scmp.eq.s32.totalorder %s19, 2
      %p88 = por %p86, %p87
      %p89 = scmp.ne.s32.totalorder %s81, %s84
      %p90 = scmp.eq.s32.totalorder %s19, 0
      %p91 = por %p89, %p90
      %p92 = scmp.ne.s32.totalorder %s81, %s84
      %p93 = scmp.eq.s32.totalorder %s24, 2
      %p94 = por %p92, %p93
      %p95 = scmp.ne.s32.totalorder %s84, %s85
      %p96 = scmp.eq.s32.totalorder %s24, 0
      %p97 = por %p95, %p96
      %p98 = scmp.ne.s32.totalorder %s84, %s85
      %p99 = scmp.eq.s32.totalorder %s25, 2
      %p100 = por %p98, %p99
      %p102 = scmp.ne.s32.totalorder %s85, %s101
      %p103 = scmp.eq.s32.totalorder %s25, 0
      %p104 = por %p102, %p103
      %s106 = sadd.s32 %s105, 1
      %p109 = scmp.eq.s32.totalorder %s19, 2
      %p110 = scmp.ne.s32.totalorder %s105, %s107
      %p111 = scmp.eq.s32.totalorder %s19, 0
      %p112 = por %p110, %p111
      %p113 = scmp.ne.s32.totalorder %s105, %s107
      %p114 = scmp.eq.s32.totalorder %s24, 2
      %p115 = por %p113, %p114
      %p116 = scmp.ne.s32.totalorder %s107, %s108
      %p117 = scmp.eq.s32.totalorder %s24, 0
      %p118 = por %p116, %p117
      %p119 = scmp.ne.s32.totalorder %s107, %s108
      %p120 = scmp.eq.s32.totalorder %s25, 2
      %p121 = por %p119, %p120
      %p123 = scmp.ne.s32.totalorder %s108, %s122
      %p124 = scmp.eq.s32.totalorder %s25, 0
      %p125 = por %p123, %p124
      %s127 = sadd.s32 %s126, 1
      %p130 = scmp.eq.s32.totalorder %s19, 2
      %p131 = scmp.ne.s32.totalorder %s126, %s128
      %p132 = scmp.eq.s32.totalorder %s19, 0
      %p133 = por %p131, %p132
      %p134 = scmp.ne.s32.totalorder %s126, %s128
      %p135 = scmp.eq.s32.totalorder %s24, 2
      %p136 = por %p134, %p135
      %p137 = scmp.ne.s32.totalorder %s128, %s129
      %p138 = scmp.eq.s32.totalorder %s24, 0
      %p139 = por %p137, %p138
      %p140 = scmp.ne.s32.totalorder %s128, %s129
      %p141 = scmp.eq.s32.totalorder %s25, 2
      %p142 = por %p140, %p141
      %p144 = scmp.ne.s32.totalorder %s129, %s143
      %p145 = scmp.eq.s32.totalorder %s25, 0
      %p146 = por %p144, %p145
      %s148 = sadd.s32 %s147, 1
      %p151 = scmp.eq.s32.totalorder %s19, 2
      %p152 = scmp.ne.s32.totalorder %s147, %s149
      %p153 = scmp.eq.s32.totalorder %s19, 0
      %p154 = por %p152, %p153
      %p155 = scmp.ne.s32.totalorder %s147, %s149
      %p156 = scmp.eq.s32.totalorder %s24, 2
      %p157 = por %p155, %p156
      %p158 = scmp.ne.s32.totalorder %s149, %s150
      %p159 = scmp.eq.s32.totalorder %s24, 0
      %p160 = por %p158, %p159
      %p161 = scmp.ne.s32.totalorder %s149, %s150
      %p162 = scmp.eq.s32.totalorder %s25, 2
      %p163 = por %p161, %p162
      %p165 = scmp.ne.s32.totalorder %s150, %s164
      %p166 = scmp.eq.s32.totalorder %s25, 0
      %p167 = por %p165, %p166
      %s169 = sadd.s32 %s168, 1
      %p172 = scmp.eq.s32.totalorder %s19, 2
      %p173 = scmp.ne.s32.totalorder %s168, %s170
      %p174 = scmp.eq.s32.totalorder %s19, 0
      %p175 = por %p173, %p174
      %p176 = scmp.ne.s32.totalorder %s168, %s170
      %p177 = scmp.eq.s32.totalorder %s24, 2
      %p178 = por %p176, %p177
      %p179 = scmp.ne.s32.totalorder %s170, %s171
      %p180 = scmp.eq.s32.totalorder %s24, 0
      %p181 = por %p179, %p180
      %p182 = scmp.ne.s32.totalorder %s170, %s171
      %p183 = scmp.eq.s32.totalorder %s25, 2
      %p184 = por %p182, %p183
      %p186 = scmp.ne.s32.totalorder %s171, %s185
      %p187 = scmp.eq.s32.totalorder %s25, 0
      %p188 = por %p186, %p187
      %s190 = sadd.s32 %s189, 1
      %p193 = scmp.eq.s32.totalorder %s19, 2
      %p194 = scmp.ne.s32.totalorder %s189, %s191
      %p195 = scmp.eq.s32.totalorder %s19, 0
      %p196 = por %p194, %p195
      %p197 = scmp.ne.s32.totalorder %s189, %s191
      %p198 = scmp.eq.s32.totalorder %s24, 2
      %p199 = por %p197, %p198
      %p200 = scmp.ne.s32.totalorder %s191, %s192
      %p201 = scmp.eq.s32.totalorder %s24, 0
      %p202 = por %p200, %p201
      %p203 = scmp.ne.s32.totalorder %s191, %s192
      %p204 = scmp.eq.s32.totalorder %s25, 2
      %p205 = por %p203, %p204
      %p207 = scmp.ne.s32.totalorder %s192, %s206
      %p208 = scmp.eq.s32.totalorder %s25, 0
      %p209 = por %p207, %p208
      %s211 = sadd.s32 %s210, 1
      %p214 = scmp.eq.s32.totalorder %s19, 2
      %p215 = scmp.ne.s32.totalorder %s210, %s212
      %p216 = scmp.eq.s32.totalorder %s19, 0
      %p217 = por %p215, %p216
      %p218 = scmp.ne.s32.totalorder %s210, %s212
      %p219 = scmp.eq.s32.totalorder %s24, 2
      %p220 = por %p218, %p219
      %p221 = scmp.ne.s32.totalorder %s212, %s213
      %p222 = scmp.eq.s32.totalorder %s24, 0
      %p223 = por %p221, %p222
      %p224 = scmp.ne.s32.totalorder %s212, %s213
      %p225 = scmp.eq.s32.totalorder %s25, 2
      %p226 = por %p224, %p225
      %p228 = scmp.ne.s32.totalorder %s213, %s227
      %p229 = scmp.eq.s32.totalorder %s25, 0
      %p230 = por %p228, %p229
      %s232 = sadd.s32 %s231, 1
      %p235 = scmp.eq.s32.totalorder %s19, 2
      %p236 = scmp.ne.s32.totalorder %s231, %s233
      %p237 = scmp.eq.s32.totalorder %s19, 0
      %p238 = por %p236, %p237
      %p239 = scmp.ne.s32.totalorder %s231, %s233
      %p240 = scmp.eq.s32.totalorder %s24, 2
      %p241 = por %p239, %p240
      %p242 = scmp.ne.s32.totalorder %s233, %s234
      %p243 = scmp.eq.s32.totalorder %s24, 0
      %p244 = por %p242, %p243
      %p245 = scmp.ne.s32.totalorder %s233, %s234
      %p246 = scmp.eq.s32.totalorder %s25, 2
      %p247 = por %p245, %p246
      %p249 = scmp.ne.s32.totalorder %s234, %s248
      %p250 = scmp.eq.s32.totalorder %s25, 0
      %p251 = por %p249, %p250
      %s253 = sadd.s32 %s252, 1
      %p256 = scmp.eq.s32.totalorder %s19, 2
      %p257 = scmp.ne.s32.totalorder %s252, %s254
      %p258 = scmp.eq.s32.totalorder %s19, 0
      %p259 = por %p257, %p258
      %p260 = scmp.ne.s32.totalorder %s252, %s254
      %p261 = scmp.eq.s32.totalorder %s24, 2
      %p262 = por %p260, %p261
      %p263 = scmp.ne.s32.totalorder %s254, %s255
      %p264 = scmp.eq.s32.totalorder %s24, 0
      %p265 = por %p263, %p264
      %p266 = scmp.ne.s32.totalorder %s254, %s255
      %p267 = scmp.eq.s32.totalorder %s25, 2
      %p268 = por %p266, %p267
      %p270 = scmp.ne.s32.totalorder %s255, %s269
      %p271 = scmp.eq.s32.totalorder %s25, 0
      %p272 = por %p270, %p271
      %s274 = sadd.s32 %s273, 1
      %p277 = scmp.eq.s32.totalorder %s19, 2
      %p278 = scmp.ne.s32.totalorder %s273, %s275
      %p279 = scmp.eq.s32.totalorder %s19, 0
      %p280 = por %p278, %p279
      %p281 = scmp.ne.s32.totalorder %s273, %s275
      %p282 = scmp.eq.s32.totalorder %s24, 2
      %p283 = por %p281, %p282
      %p284 = scmp.ne.s32.totalorder %s275, %s276
      %p285 = scmp.eq.s32.totalorder %s24, 0
      %p286 = por %p284, %p285
      %p287 = scmp.ne.s32.totalorder %s275, %s276
      %p288 = scmp.eq.s32.totalorder %s25, 2
      %p289 = por %p287, %p288
      %p291 = scmp.ne.s32.totalorder %s276, %s290
      %p292 = scmp.eq.s32.totalorder %s25, 0
      %p293 = por %p291, %p292
      %s295 = sadd.s32 %s294, 1
      %p298 = scmp.eq.s32.totalorder %s19, 2
      %p299 = scmp.ne.s32.totalorder %s294, %s296
      %p300 = scmp.eq.s32.totalorder %s19, 0
      %p301 = por %p299, %p300
      %p302 = scmp.ne.s32.totalorder %s294, %s296
      %p303 = scmp.eq.s32.totalorder %s24, 2
      %p304 = por %p302, %p303
      %p305 = scmp.ne.s32.totalorder %s296, %s297
      %p306 = scmp.eq.s32.totalorder %s24, 0
      %p307 = por %p305, %p306
      %p308 = scmp.ne.s32.totalorder %s296, %s297
      %p309 = scmp.eq.s32.totalorder %s25, 2
      %p310 = por %p308, %p309
      %p312 = scmp.ne.s32.totalorder %s297, %s311
      %p313 = scmp.eq.s32.totalorder %s25, 0
      %p314 = por %p312, %p313
      %p315 = scmp.le.s32.totalorder 1, %s19
      %p316 = scmp.lt.s32.totalorder %s19, 4
      %p317 = pnand %p315, %p316
      %p318 = pneg %p317
      // Predicated region
      $region9: #{tpu_custom_call.1} parent=5 // pred_check
        _
      $region10: #{tpu_custom_call.1} parent=5 // pred_check_branch
        %320 = sbr.rel (%p317) target = $region12
      $region11: #{tpu_custom_call.1} parent=5 // pred_region
        %s321 = ssub.s32 %s19, 1
        // Predicated region
        $region13: #{tpu_custom_call.1} parent=11 // pred_check
          %p322 = pneg %p118
        $region14: #{tpu_custom_call.1} parent=11 // pred_check_branch
          %324 = sbr.rel (%p322) target = $region16
        $region15: #{tpu_custom_call.1} parent=11 // pred_region
          _
        $region16: #{tpu_custom_call.1} parent=11 // pred_fallthru
          _
        // Predicated region
        $region17: #{tpu_custom_call.1} parent=11 // pred_check
          %p325 = pneg %p139
        $region18: #{tpu_custom_call.1} parent=11 // pred_check_branch
          %327 = sbr.rel (%p325) target = $region20
        $region19: #{tpu_custom_call.1} parent=11 // pred_region
          _
        $region20: #{tpu_custom_call.1} parent=11 // pred_fallthru
          _
        // Predicated region
        $region21: #{tpu_custom_call.1} parent=11 // pred_check
          %p328 = pneg %p160
        $region22: #{tpu_custom_call.1} parent=11 // pred_check_branch
          %330 = sbr.rel (%p328) target = $region24
        $region23: #{tpu_custom_call.1} parent=11 // pred_region
          _
        $region24: #{tpu_custom_call.1} parent=11 // pred_fallthru
          _
        // Predicated region
        $region25: #{tpu_custom_call.1} parent=11 // pred_check
          %p331 = pneg %p181
        $region26: #{tpu_custom_call.1} parent=11 // pred_check_branch
          %333 = sbr.rel (%p331) target = $region28
        $region27: #{tpu_custom_call.1} parent=11 // pred_region
          _
        $region28: #{tpu_custom_call.1} parent=11 // pred_fallthru
          _
        // Predicated region
        $region29: #{tpu_custom_call.1} parent=11 // pred_check
          %p334 = pneg %p202
        $region30: #{tpu_custom_call.1} parent=11 // pred_check_branch
          %336 = sbr.rel (%p334) target = $region32
        $region31: #{tpu_custom_call.1} parent=11 // pred_region
          _
        $region32: #{tpu_custom_call.1} parent=11 // pred_fallthru
          _
        // Predicated region
        $region33: #{tpu_custom_call.1} parent=11 // pred_check
          %p337 = pneg %p223
        $region34: #{tpu_custom_call.1} parent=11 // pred_check_branch
          %339 = sbr.rel (%p337) target = $region36
        $region35: #{tpu_custom_call.1} parent=11 // pred_region
          _
        $region36: #{tpu_custom_call.1} parent=11 // pred_fallthru
          _
        // Predicated region
        $region37: #{tpu_custom_call.1} parent=11 // pred_check
          %p340 = pneg %p244
        $region38: #{tpu_custom_call.1} parent=11 // pred_check_branch
          %342 = sbr.rel (%p340) target = $region40
        $region39: #{tpu_custom_call.1} parent=11 // pred_region
          _
        $region40: #{tpu_custom_call.1} parent=11 // pred_fallthru
          _
        // Predicated region
        $region41: #{tpu_custom_call.1} parent=11 // pred_check
          %p343 = pneg %p265
        $region42: #{tpu_custom_call.1} parent=11 // pred_check_branch
          %345 = sbr.rel (%p343) target = $region44
        $region43: #{tpu_custom_call.1} parent=11 // pred_region
          _
        $region44: #{tpu_custom_call.1} parent=11 // pred_fallthru
          _
        // Predicated region
        $region45: #{tpu_custom_call.1} parent=11 // pred_check
          %p346 = pneg %p286
        $region46: #{tpu_custom_call.1} parent=11 // pred_check_branch
          %348 = sbr.rel (%p346) target = $region48
        $region47: #{tpu_custom_call.1} parent=11 // pred_region
          _
        $region48: #{tpu_custom_call.1} parent=11 // pred_fallthru
          _
      $region12: #{tpu_custom_call.1} parent=5 // pred_fallthru
        _
      %p349 = scmp.lt.s32.totalorder %s19, 3
      // Predicated region
      $region49: #{tpu_custom_call.1} parent=5 // pred_check
        %p350 = pneg %p349
      $region50: #{tpu_custom_call.1} parent=5 // pred_check_branch
        %352 = sbr.rel (%p350) target = $region52
      $region51: #{tpu_custom_call.1} parent=5 // pred_region
        // Predicated region
        $region53: #{tpu_custom_call.1} parent=51 // pred_check
          %p353 = pneg %p39
        $region54: #{tpu_custom_call.1} parent=51 // pred_check_branch
          %355 = sbr.rel (%p353) target = $region56
        $region55: #{tpu_custom_call.1} parent=51 // pred_region
          %s356 = smul.u32 16, %s19
          %p357 = scmp.lt.s32.totalorder %s356, 47
          %s358 = scalar_select %p357, %s356, 47
          %s359 = smul.addr %s358, 8
          %s360 = scalar_lea.vmem %s0, %s359
          %s361 = smul.u32 16, %s19
        $region56: #{tpu_custom_call.1} parent=51 // pred_fallthru
          _
        // Predicated region
        $region57: #{tpu_custom_call.1} parent=51 // pred_check
          %p362 = pneg %p65
        $region58: #{tpu_custom_call.1} parent=51 // pred_check_branch
          %364 = sbr.rel (%p362) target = $region60
        $region59: #{tpu_custom_call.1} parent=51 // pred_region
          %s365 = smul.u32 16, %s19
          %p366 = scmp.lt.s32.totalorder %s365, 47
          %s367 = scalar_select %p366, %s365, 47
          %s368 = smul.addr %s367, 8
          %s369 = scalar_lea.vmem %s1, %s368
          %s370 = smul.u32 16, %s19
        $region60: #{tpu_custom_call.1} parent=51 // pred_fallthru
          _
        // Predicated region
        $region61: #{tpu_custom_call.1} parent=51 // pred_check
          %p371 = pneg %p91
        $region62: #{tpu_custom_call.1} parent=51 // pred_check_branch
          %373 = sbr.rel (%p371) target = $region64
        $region63: #{tpu_custom_call.1} parent=51 // pred_region
          %p374 = scmp.lt.s32.totalorder %s19, 2
          %s375 = scalar_select %p374, %s19, 2
          %s376 = scalar_lea.vmem %s2, %s375
        $region64: #{tpu_custom_call.1} parent=51 // pred_fallthru
          _
      $region52: #{tpu_custom_call.1} parent=5 // pred_fallthru
        _
      %p377 = scmp.le.s32.totalorder 1, %s19
      %p378 = scmp.lt.s32.totalorder %s19, 4
      %p379 = pnand %p377, %p378
      %p380 = pneg %p379
      // Predicated region
      $region65: #{tpu_custom_call.1} parent=5 // pred_check
        _
      $region66: #{tpu_custom_call.1} parent=5 // pred_check_branch
        %382 = sbr.rel (%p379) target = $region68
      $region67: #{tpu_custom_call.1} parent=5 // pred_region
        %s383 = ssub.s32 %s19, 1
        %s384 = smul.u32 16, %s24
        %p385 = scmp.lt.s32.totalorder %s384, 47
        %s386 = scalar_select %p385, %s384, 47
        %s387 = smul.addr %s386, 8
        %s388 = scalar_lea.vmem %s0, %s387
        %p389 = pneg %p45
        %p390 = pneg %p42
        %s391 = smul.u32 16, %s24
        %p392 = scmp.lt.s32.totalorder %s391, 47
        %s393 = scalar_select %p392, %s391, 47
        %s394 = smul.addr %s393, 8
        %s395 = scalar_lea.vmem %s1, %s394
        %p396 = pneg %p71
        %p397 = pneg %p68
        %p398 = scmp.lt.s32.totalorder %s24, 2
        %s399 = scalar_select %p398, %s24, 2
        %s400 = scalar_lea.vmem %s2, %s399
        %p401 = pneg %p97
        %p402 = pneg %p94
        %p403 = pneg %p118
        %p404 = pneg %p115
        %p405 = pneg %p139
        %p406 = pneg %p136
        %p407 = pneg %p160
        %p408 = pneg %p157
        %p409 = pneg %p181
        %p410 = pneg %p178
        %p411 = pneg %p202
        %p412 = pneg %p199
        %p413 = pneg %p223
        %p414 = pneg %p220
        %p415 = pneg %p244
        %p416 = pneg %p241
        %p417 = pneg %p265
        %p418 = pneg %p262
        %p419 = pneg %p286
        %p420 = pneg %p283
        %p421 = pneg %p307
        %p422 = pneg %p304
        %s423 = smul.u32 16, %s24
        %p424 = scmp.lt.s32.totalorder %s423, 47
        %s425 = scalar_select %p424, %s423, 47
        %s426 = smul.addr %s425, 8
        %s427 = scalar_lea.vmem %s0, %s426
        %s428 = smul.u32 16, %s24
        %s429 = smul.u32 16, %s24
        %p430 = scmp.lt.s32.totalorder %s429, 47
        %s431 = scalar_select %p430, %s429, 47
        %s432 = smul.addr %s431, 8
        %s433 = scalar_lea.vmem %s1, %s432
        %s434 = smul.u32 16, %s24
        %p435 = scmp.lt.s32.totalorder %s24, 2
        %s436 = scalar_select %p435, %s24, 2
        %s437 = scalar_lea.vmem %s2, %s436
        %p439 = scmp.eq.s32.totalorder %s24, 0
        // Predicated region
        $region69: #{tpu_custom_call.1} parent=67 // pred_check
          %p440 = pneg %p439
        $region70: #{tpu_custom_call.1} parent=67 // pred_check_branch
          %442 = sbr.rel (%p440) target = $region72
        $region71: #{tpu_custom_call.1} parent=67 // pred_region
          %443 = vst [vmem:[#allocation2] sm:$0xff] 0.0
          %444 = vst [vmem:[#allocation2 + $0x8] sm:$0xff] 0.0
        $region72: #{tpu_custom_call.1} parent=67 // pred_fallthru
          _
        %v445 = vld [vmem:[%s3] sm:$0xff]
        %v446 = vld [vmem:[%s427] sm:$0xff]
        %v447 = vld [vmem:[%s427 + $0x8] sm:$0xff]
        %v448 = vld [vmem:[%s427 + $0x10] sm:$0xff]
        %v449 = vld [vmem:[%s427 + $0x18] sm:$0xff]
        %v450 = vld [vmem:[%s427 + $0x20] sm:$0xff]
        %v451 = vld [vmem:[%s427 + $0x28] sm:$0xff]
        %v452 = vld [vmem:[%s427 + $0x30] sm:$0xff]
        %v453 = vld [vmem:[%s427 + $0x38] sm:$0xff]
        %v454 = vld [vmem:[%s427 + $0x40] sm:$0xff]
        %v455 = vld [vmem:[%s427 + $0x48] sm:$0xff]
        %v456 = vld [vmem:[%s427 + $0x50] sm:$0xff]
        %v457 = vld [vmem:[%s427 + $0x58] sm:$0xff]
        %v458 = vld [vmem:[%s427 + $0x60] sm:$0xff]
        %v459 = vld [vmem:[%s427 + $0x68] sm:$0xff]
        %v460 = vld [vmem:[%s427 + $0x70] sm:$0xff]
        %v461 = vld [vmem:[%s427 + $0x78] sm:$0xff]
        %v462 = vpack.c.bf16 %v447, %v446
        %v463 = vpack.c.bf16 %v449, %v448
        %v464 = vpack.c.bf16 %v451, %v450
        %v465 = vpack.c.bf16 %v453, %v452
        %v466 = vpack.c.bf16 %v455, %v454
        %v467 = vpack.c.bf16 %v457, %v456
        %v468 = vpack.c.bf16 %v459, %v458
        %v469 = vpack.c.bf16 %v461, %v460
        %v470 = vunpack.c.l.bf16 %v462
        %v471 = vunpack.c.h.bf16 %v462
        %v472 = vunpack.c.l.bf16 %v463
        %v473 = vunpack.c.h.bf16 %v463
        %v474 = vunpack.c.l.bf16 %v464
        %v475 = vunpack.c.h.bf16 %v464
        %v476 = vunpack.c.l.bf16 %v465
        %v477 = vunpack.c.h.bf16 %v465
        %v478 = vunpack.c.l.bf16 %v466
        %v479 = vunpack.c.h.bf16 %v466
        %v480 = vunpack.c.l.bf16 %v467
        %v481 = vunpack.c.h.bf16 %v467
        %v482 = vunpack.c.l.bf16 %v468
        %v483 = vunpack.c.h.bf16 %v468
        %v484 = vunpack.c.l.bf16 %v469
        %v485 = vunpack.c.h.bf16 %v469
        %v486 = vsub.f32 %v446, %v470
        %v487 = vsub.f32 %v447, %v471
        %v488 = vsub.f32 %v448, %v472
        %v489 = vsub.f32 %v449, %v473
        %v490 = vsub.f32 %v450, %v474
        %v491 = vsub.f32 %v451, %v475
        %v492 = vsub.f32 %v452, %v476
        %v493 = vsub.f32 %v453, %v477
        %v494 = vsub.f32 %v454, %v478
        %v495 = vsub.f32 %v455, %v479
        %v496 = vsub.f32 %v456, %v480
        %v497 = vsub.f32 %v457, %v481
        %v498 = vsub.f32 %v458, %v482
        %v499 = vsub.f32 %v459, %v483
        %v500 = vsub.f32 %v460, %v484
        %v501 = vsub.f32 %v461, %v485
        %v502 = vpack.c.bf16 %v487, %v486
        %v503 = vpack.c.bf16 %v489, %v488
        %v504 = vpack.c.bf16 %v491, %v490
        %v505 = vpack.c.bf16 %v493, %v492
        %v506 = vpack.c.bf16 %v495, %v494
        %v507 = vpack.c.bf16 %v497, %v496
        %v508 = vpack.c.bf16 %v499, %v498
        %v509 = vpack.c.bf16 %v501, %v500
        %v510 = vld [vmem:[%s4] sm:$0xf]
        %vm511 = vcmask 64512
        %v513 = vsel %vm511, %v502, 0
        %v516 = vsel %vm511, %v503, 0
        %v519 = vsel %vm511, %v504, 0
        %v522 = vsel %vm511, %v505, 0
        %v525 = vsel %vm511, %v506, 0
        %v528 = vsel %vm511, %v507, 0
        %v531 = vsel %vm511, %v508, 0
        %v534 = vsel %vm511, %v509, 0
        %vm536 = vcmask 1043456
        %v538 = vsel %vm536, %v510, 0
        %540 = vmatprep.subr.bf16.mxu0 0
        %541 = vmatpush1.bf16.msra.mxu0 %v538
        %542 = vmatprep.subr.bf16.mxu0 0
        %543 = vmatpush1.bf16.msra.mxu0 0
        %544 = vmatprep.subr.bf16.mxu0 0
        %545 = vmatpush1.bf16.msra.mxu0 0
        %546 = vmatprep.subr.bf16.mxu0 0
        %547 = vmatpush1.bf16.msra.mxu0 0
        %548 = vmatprep.subr.bf16.mxu0 0
        %549 = vmatpush1.bf16.msra.mxu0 0
        %550 = vmatprep.subr.bf16.mxu0 0
        %551 = vmatpush1.bf16.msra.mxu0 0
        %552 = vmatprep.subr.bf16.mxu0 0
        %553 = vmatpush1.bf16.msra.mxu0 0
        %554 = vmatprep.subr.bf16.mxu0 0
        %555 = vmatpush1.bf16.msra.mxu0 0
        %556 = vmatprep.subr.bf16.mxu0 0
        %557 = vmatpush1.bf16.msra.mxu0 0
        %558 = vmatprep.subr.bf16.mxu0 0
        %559 = vmatpush1.bf16.msra.mxu0 0
        %560 = vmatprep.subr.bf16.mxu0 0
        %561 = vmatpush1.bf16.msra.mxu0 0
        %562 = vmatprep.subr.bf16.mxu0 0
        %563 = vmatpush1.bf16.msra.mxu0 0
        %564 = vmatprep.subr.bf16.mxu0 0
        %565 = vmatpush1.bf16.msra.mxu0 0
        %566 = vmatprep.subr.bf16.mxu0 0
        %567 = vmatpush1.bf16.msra.mxu0 0
        %568 = vmatprep.subr.bf16.mxu0 0
        %569 = vmatpush1.bf16.msra.mxu0 0
        %570 = vmatprep.subr.bf16.mxu0 0
        %571 = vmatpush1.bf16.msra.mxu0 0
        %572 = vmatprep.mubr.bf16.mxu0 0
        %573 = vmatmul.mubr.bf16.gmra.mrb[0].mxu0 %v513
        %v574 = vpop.f32.mrb[0].mxu0
        %v575 = vadd.f32 0.0, %v574
        %v576 = vpop.f32.mrb[0].mxu0
        %v577 = vpop.f32.mrb[0].mxu0
        %v578 = vadd.f32 0.0, %v577
        %v579 = vpop.f32.mrb[0].mxu0
        %580 = vmatprep.mubr.bf16.mxu0 0
        %581 = vmatmul.mubr.bf16.gmra.mrb[0].mxu0 %v516
        %v582 = vpop.f32.mrb[0].mxu0
        %v583 = vadd.f32 0.0, %v582
        %v584 = vpop.f32.mrb[0].mxu0
        %v585 = vpop.f32.mrb[0].mxu0
        %v586 = vadd.f32 0.0, %v585
        %v587 = vpop.f32.mrb[0].mxu0
        %588 = vmatprep.mubr.bf16.mxu0 0
        %589 = vmatmul.mubr.bf16.gmra.mrb[0].mxu0 %v519
        %v590 = vpop.f32.mrb[0].mxu0
        %v591 = vadd.f32 0.0, %v590
        %v592 = vpop.f32.mrb[0].mxu0
        %v593 = vpop.f32.mrb[0].mxu0
        %v594 = vadd.f32 0.0, %v593
        %v595 = vpop.f32.mrb[0].mxu0
        %596 = vmatprep.mubr.bf16.mxu0 0
        %597 = vmatmul.mubr.bf16.gmra.mrb[0].mxu0 %v522
        %v598 = vpop.f32.mrb[0].mxu0
        %v599 = vadd.f32 0.0, %v598
        %v600 = vpop.f32.mrb[0].mxu0
        %v601 = vpop.f32.mrb[0].mxu0
        %v602 = vadd.f32 0.0, %v601
        %v603 = vpop.f32.mrb[0].mxu0
        %604 = vmatprep.mubr.bf16.mxu0 0
        %605 = vmatmul.mubr.bf16.gmra.mrb[0].mxu0 %v525
        %v606 = vpop.f32.mrb[0].mxu0
        %v607 = vadd.f32 0.0, %v606
        %v608 = vpop.f32.mrb[0].mxu0
        %v609 = vpop.f32.mrb[0].mxu0
        %v610 = vadd.f32 0.0, %v609
        %v611 = vpop.f32.mrb[0].mxu0
        %612 = vmatprep.mubr.bf16.mxu0 0
        %613 = vmatmul.mubr.bf16.gmra.mrb[0].mxu0 %v528
        %v614 = vpop.f32.mrb[0].mxu0
        %v615 = vadd.f32 0.0, %v614
        %v616 = vpop.f32.mrb[0].mxu0
        %v617 = vpop.f32.mrb[0].mxu0
        %v618 = vadd.f32 0.0, %v617
        %v619 = vpop.f32.mrb[0].mxu0
        %620 = vmatprep.mubr.bf16.mxu0 0
        %621 = vmatmul.mubr.bf16.gmra.mrb[0].mxu0 %v531
        %v622 = vpop.f32.mrb[0].mxu0
        %v623 = vadd.f32 0.0, %v622
        %v624 = vpop.f32.mrb[0].mxu0
        %v625 = vpop.f32.mrb[0].mxu0
        %v626 = vadd.f32 0.0, %v625
        %v627 = vpop.f32.mrb[0].mxu0
        %628 = vmatprep.mubr.bf16.mxu0 0
        %629 = vmatmul.mubr.bf16.gmra.mrb[0].mxu0 %v534
        %v630 = vpop.f32.mrb[0].mxu0
        %v631 = vadd.f32 0.0, %v630
        %v632 = vpop.f32.mrb[0].mxu0
        %v633 = vpop.f32.mrb[0].mxu0
        %v634 = vadd.f32 0.0, %v633
        %v635 = vpop.f32.mrb[0].mxu0
        %636 = vdwg.mxu0
        %v638 = vsel %vm511, %v462, 0
        %v641 = vsel %vm511, %v463, 0
        %v644 = vsel %vm511, %v464, 0
        %v647 = vsel %vm511, %v465, 0
        %v650 = vsel %vm511, %v466, 0
        %v653 = vsel %vm511, %v467, 0
        %v656 = vsel %vm511, %v468, 0
        %v659 = vsel %vm511, %v469, 0
        %661 = vmatprep.subr.bf16.mxu0 0
        %662 = vmatpush1.bf16.msra.mxu0 %v538
        %663 = vmatprep.subr.bf16.mxu0 0
        %664 = vmatpush1.bf16.msra.mxu0 0
        %665 = vmatprep.subr.bf16.mxu0 0
        %666 = vmatpush1.bf16.msra.mxu0 0
        %667 = vmatprep.subr.bf16.mxu0 0
        %668 = vmatpush1.bf16.msra.mxu0 0
        %669 = vmatprep.subr.bf16.mxu0 0
        %670 = vmatpush1.bf16.msra.mxu0 0
        %671 = vmatprep.subr.bf16.mxu0 0
        %672 = vmatpush1.bf16.msra.mxu0 0
        %673 = vmatprep.subr.bf16.mxu0 0
        %674 = vmatpush1.bf16.msra.mxu0 0
        %675 = vmatprep.subr.bf16.mxu0 0
        %676 = vmatpush1.bf16.msra.mxu0 0
        %677 = vmatprep.subr.bf16.mxu0 0
        %678 = vmatpush1.bf16.msra.mxu0 0
        %679 = vmatprep.subr.bf16.mxu0 0
        %680 = vmatpush1.bf16.msra.mxu0 0
        %681 = vmatprep.subr.bf16.mxu0 0
        %682 = vmatpush1.bf16.msra.mxu0 0
        %683 = vmatprep.subr.bf16.mxu0 0
        %684 = vmatpush1.bf16.msra.mxu0 0
        %685 = vmatprep.subr.bf16.mxu0 0
        %686 = vmatpush1.bf16.msra.mxu0 0
        %687 = vmatprep.subr.bf16.mxu0 0
        %688 = vmatpush1.bf16.msra.mxu0 0
        %689 = vmatprep.subr.bf16.mxu0 0
        %690 = vmatpush1.bf16.msra.mxu0 0
        %691 = vmatprep.subr.bf16.mxu0 0
        %692 = vmatpush1.bf16.msra.mxu0 0
        %693 = vmatprep.mubr.bf16.mxu0 0
        %694 = vmatmul.mubr.bf16.gmra.mrb[0].mxu0 %v638
        %v695 = vpop.f32.mrb[0].mxu0
        %v696 = vadd.f32 %v575, %v695
        %v697 = vpop.f32.mrb[0].mxu0
        %v698 = vpop.f32.mrb[0].mxu0
        %v699 = vadd.f32 %v578, %v698
        %v700 = vpop.f32.mrb[0].mxu0
        %701 = vmatprep.mubr.bf16.mxu0 0
        %702 = vmatmul.mubr.bf16.gmra.mrb[0].mxu0 %v641
        %v703 = vpop.f32.mrb[0].mxu0
        %v704 = vadd.f32 %v583, %v703
        %v705 = vpop.f32.mrb[0].mxu0
        %v706 = vpop.f32.mrb[0].mxu0
        %v707 = vadd.f32 %v586, %v706
        %v708 = vpop.f32.mrb[0].mxu0
        %709 = vmatprep.mubr.bf16.mxu0 0
        %710 = vmatmul.mubr.bf16.gmra.mrb[0].mxu0 %v644
        %v711 = vpop.f32.mrb[0].mxu0
        %v712 = vadd.f32 %v591, %v711
        %v713 = vpop.f32.mrb[0].mxu0
        %v714 = vpop.f32.mrb[0].mxu0
        %v715 = vadd.f32 %v594, %v714
        %v716 = vpop.f32.mrb[0].mxu0
        %717 = vmatprep.mubr.bf16.mxu0 0
        %718 = vmatmul.mubr.bf16.gmra.mrb[0].mxu0 %v647
        %v719 = vpop.f32.mrb[0].mxu0
        %v720 = vadd.f32 %v599, %v719
        %v721 = vpop.f32.mrb[0].mxu0
        %v722 = vpop.f32.mrb[0].mxu0
        %v723 = vadd.f32 %v602, %v722
        %v724 = vpop.f32.mrb[0].mxu0
        %725 = vmatprep.mubr.bf16.mxu0 0
        %726 = vmatmul.mubr.bf16.gmra.mrb[0].mxu0 %v650
        %v727 = vpop.f32.mrb[0].mxu0
        %v728 = vadd.f32 %v607, %v727
        %v729 = vpop.f32.mrb[0].mxu0
        %v730 = vpop.f32.mrb[0].mxu0
        %v731 = vadd.f32 %v610, %v730
        %v732 = vpop.f32.mrb[0].mxu0
        %733 = vmatprep.mubr.bf16.mxu0 0
        %734 = vmatmul.mubr.bf16.gmra.mrb[0].mxu0 %v653
        %v735 = vpop.f32.mrb[0].mxu0
        %v736 = vadd.f32 %v615, %v735
        %v737 = vpop.f32.mrb[0].mxu0
        %v738 = vpop.f32.mrb[0].mxu0
        %v739 = vadd.f32 %v618, %v738
        %v740 = vpop.f32.mrb[0].mxu0
        %741 = vmatprep.mubr.bf16.mxu0 0
        %742 = vmatmul.mubr.bf16.gmra.mrb[0].mxu0 %v656
        %v743 = vpop.f32.mrb[0].mxu0
        %v744 = vadd.f32 %v623, %v743
        %v745 = vpop.f32.mrb[0].mxu0
        %v746 = vpop.f32.mrb[0].mxu0
        %v747 = vadd.f32 %v626, %v746
        %v748 = vpop.f32.mrb[0].mxu0
        %749 = vmatprep.mubr.bf16.mxu0 0
        %750 = vmatmul.mubr.bf16.gmra.mrb[0].mxu0 %v659
        %v751 = vpop.f32.mrb[0].mxu0
        %v752 = vadd.f32 %v631, %v751
        %v753 = vpop.f32.mrb[0].mxu0
        %v754 = vpop.f32.mrb[0].mxu0
        %v755 = vadd.f32 %v634, %v754
        %v756 = vpop.f32.mrb[0].mxu0
        %757 = vdwg.mxu0
        %v758 = vlaneseq
        %v759 = vshrl.u32 %v758, 7
        %v760 = vsub.s32 5, %v759
        %v761 = vrot.slane %v445, %v760
        %v762 = vsub.f32 %v696, %v761
        %v763 = vsub.f32 %v699, %v761
        %v764 = vsub.f32 %v704, %v761
        %v765 = vsub.f32 %v707, %v761
        %v766 = vsub.f32 %v712, %v761
        %v767 = vsub.f32 %v715, %v761
        %v768 = vsub.f32 %v720, %v761
        %v769 = vsub.f32 %v723, %v761
        %v770 = vsub.f32 %v728, %v761
        %v771 = vsub.f32 %v731, %v761
        %v772 = vsub.f32 %v736, %v761
        %v773 = vsub.f32 %v739, %v761
        %v774 = vsub.f32 %v744, %v761
        %v775 = vsub.f32 %v747, %v761
        %v776 = vsub.f32 %v752, %v761
        %v777 = vsub.f32 %v755, %v761
        %v778 = vlaneseq
        %v779 = vshrl.u32 %v778, 7
        %v780 = vsub.s32 6, %v779
        %v781 = vrot.slane %v445, %v780
        %v782 = vmul.f32 %v781, %v762
        %v783 = vmul.f32 %v781, %v763
        %v784 = vmul.f32 %v781, %v764
        %v785 = vmul.f32 %v781, %v765
        %v786 = vmul.f32 %v781, %v766
        %v787 = vmul.f32 %v781, %v767
        %v788 = vmul.f32 %v781, %v768
        %v789 = vmul.f32 %v781, %v769
        %v790 = vmul.f32 %v781, %v770
        %v791 = vmul.f32 %v781, %v771
        %v792 = vmul.f32 %v781, %v772
        %v793 = vmul.f32 %v781, %v773
        %v794 = vmul.f32 %v781, %v774
        %v795 = vmul.f32 %v781, %v775
        %v796 = vmul.f32 %v781, %v776
        %v797 = vmul.f32 %v781, %v777
        %v798 = vmul.f32 %v782, %v762
        %v799 = vmul.f32 %v783, %v763
        %v800 = vmul.f32 %v784, %v764
        %v801 = vmul.f32 %v785, %v765
        %v802 = vmul.f32 %v786, %v766
        %v803 = vmul.f32 %v787, %v767
        %v804 = vmul.f32 %v788, %v768
        %v805 = vmul.f32 %v789, %v769
        %v806 = vmul.f32 %v790, %v770
        %v807 = vmul.f32 %v791, %v771
        %v808 = vmul.f32 %v792, %v772
        %v809 = vmul.f32 %v793, %v773
        %v810 = vmul.f32 %v794, %v774
        %v811 = vmul.f32 %v795, %v775
        %v812 = vmul.f32 %v796, %v776
        %v813 = vmul.f32 %v797, %v777
        %v814 = vmul.f32 %v798, 1.442695
        %v815 = vpow.pop %v814
        %v816 = vmul.f32 %v799, 1.442695
        %v817 = vpow.pop %v816
        %v818 = vmul.f32 %v800, 1.442695
        %v819 = vpow.pop %v818
        %v820 = vmul.f32 %v801, 1.442695
        %v821 = vpow.pop %v820
        %v822 = vmul.f32 %v802, 1.442695
        %v823 = vpow.pop %v822
        %v824 = vmul.f32 %v803, 1.442695
        %v825 = vpow.pop %v824
        %v826 = vmul.f32 %v804, 1.442695
        %v827 = vpow.pop %v826
        %v828 = vmul.f32 %v805, 1.442695
        %v829 = vpow.pop %v828
        %v830 = vmul.f32 %v806, 1.442695
        %v831 = vpow.pop %v830
        %v832 = vmul.f32 %v807, 1.442695
        %v833 = vpow.pop %v832
        %v834 = vmul.f32 %v808, 1.442695
        %v835 = vpow.pop %v834
        %v836 = vmul.f32 %v809, 1.442695
        %v837 = vpow.pop %v836
        %v838 = vmul.f32 %v810, 1.442695
        %v839 = vpow.pop %v838
        %v840 = vmul.f32 %v811, 1.442695
        %v841 = vpow.pop %v840
        %v842 = vmul.f32 %v812, 1.442695
        %v843 = vpow.pop %v842
        %v844 = vmul.f32 %v813, 1.442695
        %v845 = vpow.pop %v844
        %v846 = vld [vmem:[%s6] sm:$0xf]
        %v847 = vld [vmem:[%s6 + $0x4] sm:$0xf]
        %v848 = vld [vmem:[%s6 + $0x8] sm:$0xf]
        %v849 = vld [vmem:[%s6 + $0xc] sm:$0xf]
        %v850 = vld [vmem:[%s6 + $0x10] sm:$0xf]
        %v851 = vld [vmem:[%s6 + $0x14] sm:$0xf]
        %v852 = vld [vmem:[%s6 + $0x18] sm:$0xf]
        %v853 = vld [vmem:[%s6 + $0x1c] sm:$0xf]
        %v854 = vld [vmem:[%s6 + $0x20] sm:$0xf]
        %v855 = vld [vmem:[%s6 + $0x24] sm:$0xf]
        %v856 = vld [vmem:[%s6 + $0x28] sm:$0xf]
        %v857 = vld [vmem:[%s6 + $0x2c] sm:$0xf]
        %v858 = vld [vmem:[%s6 + $0x30] sm:$0xf]
        %v859 = vld [vmem:[%s6 + $0x34] sm:$0xf]
        %v860 = vld [vmem:[%s6 + $0x38] sm:$0xf]
        %v861 = vld [vmem:[%s6 + $0x3c] sm:$0xf]
        %v862 = vpack.c.bf16 %v817, %v815
        %v863 = vpack.c.bf16 %v821, %v819
        %v864 = vpack.c.bf16 %v825, %v823
        %v865 = vpack.c.bf16 %v829, %v827
        %v866 = vpack.c.bf16 %v833, %v831
        %v867 = vpack.c.bf16 %v837, %v835
        %v868 = vpack.c.bf16 %v841, %v839
        %v869 = vpack.c.bf16 %v845, %v843
        %v870 = vlaneseq
        %v871 = vshrl.u32 %v870, 7
        %v872 = vsub.s32 3, %v871
        %v873 = vrot.slane %v445, %v872
        %v890 = vunpack.c.l.b16 %v846
        %v891 = vunpack.c.l.b16 %v847
        %v892 = vunpack.c.l.b16 %v848
        %v893 = vunpack.c.l.b16 %v849
        %v894 = vunpack.c.l.b16 %v850
        %v895 = vunpack.c.l.b16 %v851
        %v896 = vunpack.c.l.b16 %v852
        %v897 = vunpack.c.l.b16 %v853
        %v898 = vunpack.c.l.b16 %v854
        %v899 = vunpack.c.l.b16 %v855
        %v900 = vunpack.c.l.b16 %v856
        %v901 = vunpack.c.l.b16 %v857
        %v902 = vunpack.c.l.b16 %v858
        %v903 = vunpack.c.l.b16 %v859
        %v904 = vunpack.c.l.b16 %v860
        %v905 = vunpack.c.l.b16 %v861
        %v906 = vpack.c.b16 %v891, %v890
        %v907 = vpack.c.b16 %v893, %v892
        %v908 = vpack.c.b16 %v895, %v894
        %v909 = vpack.c.b16 %v897, %v896
        %v910 = vpack.c.b16 %v899, %v898
        %v911 = vpack.c.b16 %v901, %v900
        %v912 = vpack.c.b16 %v903, %v902
        %v913 = vpack.c.b16 %v905, %v904
        %922 = vmatprep.subr.bf16.mxu0 0
        %923 = vmatpush1.bf16.msra.mxu0 %v906
        %924 = vmatprep.subr.bf16.mxu0 0
        %925 = vmatpush1.bf16.msra.mxu0 %v907
        %926 = vmatprep.subr.bf16.mxu0 0
        %927 = vmatpush1.bf16.msra.mxu0 %v908
        %928 = vmatprep.subr.bf16.mxu0 0
        %929 = vmatpush1.bf16.msra.mxu0 %v909
        %930 = vmatprep.subr.bf16.mxu0 0
        %931 = vmatpush1.bf16.msra.mxu0 %v910
        %932 = vmatprep.subr.bf16.mxu0 0
        %933 = vmatpush1.bf16.msra.mxu0 %v911
        %934 = vmatprep.subr.bf16.mxu0 0
        %935 = vmatpush1.bf16.msra.mxu0 %v912
        %936 = vmatprep.subr.bf16.mxu0 0
        %937 = vmatpush1.bf16.msra.mxu0 %v913
        %938 = vmatprep.subr.bf16.mxu0 0
        %939 = vmatpush1.bf16.msra.mxu0 0
        %940 = vmatprep.subr.bf16.mxu0 0
        %941 = vmatpush1.bf16.msra.mxu0 0
        %942 = vmatprep.subr.bf16.mxu0 0
        %943 = vmatpush1.bf16.msra.mxu0 0
        %944 = vmatprep.subr.bf16.mxu0 0
        %945 = vmatpush1.bf16.msra.mxu0 0
        %946 = vmatprep.subr.bf16.mxu0 0
        %947 = vmatpush1.bf16.msra.mxu0 0
        %948 = vmatprep.subr.bf16.mxu0 0
        %949 = vmatpush1.bf16.msra.mxu0 0
        %950 = vmatprep.subr.bf16.mxu0 0
        %951 = vmatpush1.bf16.msra.mxu0 0
        %952 = vmatprep.subr.bf16.mxu0 0
        %953 = vmatpush1.bf16.msra.mxu0 0
        %954 = vmatprep.mubr.bf16.mxu0 0
        %955 = vmatmul.mubr.bf16.gmra.mrb[0].mxu0 %v862
        %v956 = vpop.f32.mrb[0].mxu0
        %v957 = vadd.f32 %v873, %v956
        %v958 = vpop.f32.mrb[0].mxu0
        %v959 = vpop.f32.mrb[0].mxu0
        %v960 = vadd.f32 %v873, %v959
        %v961 = vpop.f32.mrb[0].mxu0
        %962 = vmatprep.mubr.bf16.mxu0 0
        %963 = vmatmul.mubr.bf16.gmra.mrb[0].mxu0 %v863
        %v964 = vpop.f32.mrb[0].mxu0
        %v965 = vadd.f32 %v873, %v964
        %v966 = vpop.f32.mrb[0].mxu0
        %v967 = vpop.f32.mrb[0].mxu0
        %v968 = vadd.f32 %v873, %v967
        %v969 = vpop.f32.mrb[0].mxu0
        %970 = vmatprep.mubr.bf16.mxu0 0
        %971 = vmatmul.mubr.bf16.gmra.mrb[0].mxu0 %v864
        %v972 = vpop.f32.mrb[0].mxu0
        %v973 = vadd.f32 %v873, %v972
        %v974 = vpop.f32.mrb[0].mxu0
        %v975 = vpop.f32.mrb[0].mxu0
        %v976 = vadd.f32 %v873, %v975
        %v977 = vpop.f32.mrb[0].mxu0
        %978 = vmatprep.mubr.bf16.mxu0 0
        %979 = vmatmul.mubr.bf16.gmra.mrb[0].mxu0 %v865
        %v980 = vpop.f32.mrb[0].mxu0
        %v981 = vadd.f32 %v873, %v980
        %v982 = vpop.f32.mrb[0].mxu0
        %v983 = vpop.f32.mrb[0].mxu0
        %v984 = vadd.f32 %v873, %v983
        %v985 = vpop.f32.mrb[0].mxu0
        %986 = vmatprep.mubr.bf16.mxu0 0
        %987 = vmatmul.mubr.bf16.gmra.mrb[0].mxu0 %v866
        %v988 = vpop.f32.mrb[0].mxu0
        %v989 = vadd.f32 %v873, %v988
        %v990 = vpop.f32.mrb[0].mxu0
        %v991 = vpop.f32.mrb[0].mxu0
        %v992 = vadd.f32 %v873, %v991
        %v993 = vpop.f32.mrb[0].mxu0
        %994 = vmatprep.mubr.bf16.mxu0 0
        %995 = vmatmul.mubr.bf16.gmra.mrb[0].mxu0 %v867
        %v996 = vpop.f32.mrb[0].mxu0
        %v997 = vadd.f32 %v873, %v996
        %v998 = vpop.f32.mrb[0].mxu0
        %v999 = vpop.f32.mrb[0].mxu0
        %v1000 = vadd.f32 %v873, %v999
        %v1001 = vpop.f32.mrb[0].mxu0
        %1002 = vmatprep.mubr.bf16.mxu0 0
        %1003 = vmatmul.mubr.bf16.gmra.mrb[0].mxu0 %v868
        %v1004 = vpop.f32.mrb[0].mxu0
        %v1005 = vadd.f32 %v873, %v1004
        %v1006 = vpop.f32.mrb[0].mxu0
        %v1007 = vpop.f32.mrb[0].mxu0
        %v1008 = vadd.f32 %v873, %v1007
        %v1009 = vpop.f32.mrb[0].mxu0
        %1010 = vmatprep.mubr.bf16.mxu0 0
        %1011 = vmatmul.mubr.bf16.gmra.mrb[0].mxu0 %v869
        %v1012 = vpop.f32.mrb[0].mxu0
        %v1013 = vadd.f32 %v873, %v1012
        %v1014 = vpop.f32.mrb[0].mxu0
        %v1015 = vpop.f32.mrb[0].mxu0
        %v1016 = vadd.f32 %v873, %v1015
        %v1017 = vpop.f32.mrb[0].mxu0
        %1018 = vdwg.mxu0
        %v1019 = vmax.f32 %v957, 0.0
        %v1020 = vmax.f32 %v960, 0.0
        %v1021 = vmax.f32 %v965, 0.0
        %v1022 = vmax.f32 %v968, 0.0
        %v1023 = vmax.f32 %v973, 0.0
        %v1024 = vmax.f32 %v976, 0.0
        %v1025 = vmax.f32 %v981, 0.0
        %v1026 = vmax.f32 %v984, 0.0
        %v1027 = vmax.f32 %v989, 0.0
        %v1028 = vmax.f32 %v992, 0.0
        %v1029 = vmax.f32 %v997, 0.0
        %v1030 = vmax.f32 %v1000, 0.0
        %v1031 = vmax.f32 %v1005, 0.0
        %v1032 = vmax.f32 %v1008, 0.0
        %v1033 = vmax.f32 %v1013, 0.0
        %v1034 = vmax.f32 %v1016, 0.0
        %v1035 = vld [vmem:[%s7] sm:$0xf]
        %v1036 = vld [vmem:[%s7 + $0x4] sm:$0xf]
        %v1037 = vld [vmem:[%s7 + $0x8] sm:$0xf]
        %v1038 = vld [vmem:[%s7 + $0xc] sm:$0xf]
        %v1039 = vld [vmem:[%s7 + $0x10] sm:$0xf]
        %v1040 = vld [vmem:[%s7 + $0x14] sm:$0xf]
        %v1041 = vld [vmem:[%s7 + $0x18] sm:$0xf]
        %v1042 = vld [vmem:[%s7 + $0x1c] sm:$0xf]
        %v1043 = vld [vmem:[%s7 + $0x20] sm:$0xf]
        %v1044 = vld [vmem:[%s7 + $0x24] sm:$0xf]
        %v1045 = vld [vmem:[%s7 + $0x28] sm:$0xf]
        %v1046 = vld [vmem:[%s7 + $0x2c] sm:$0xf]
        %v1047 = vld [vmem:[%s7 + $0x30] sm:$0xf]
        %v1048 = vld [vmem:[%s7 + $0x34] sm:$0xf]
        %v1049 = vld [vmem:[%s7 + $0x38] sm:$0xf]
        %v1050 = vld [vmem:[%s7 + $0x3c] sm:$0xf]
        %v1051 = vpack.c.bf16 %v1020, %v1019
        %v1052 = vpack.c.bf16 %v1022, %v1021
        %v1053 = vpack.c.bf16 %v1024, %v1023
        %v1054 = vpack.c.bf16 %v1026, %v1025
        %v1055 = vpack.c.bf16 %v1028, %v1027
        %v1056 = vpack.c.bf16 %v1030, %v1029
        %v1057 = vpack.c.bf16 %v1032, %v1031
        %v1058 = vpack.c.bf16 %v1034, %v1033
        %v1059 = vlaneseq
        %v1060 = vshrl.u32 %v1059, 7
        %v1061 = vsub.s32 4, %v1060
        %v1062 = vrot.slane %v445, %v1061
        %v1079 = vunpack.c.l.b16 %v1035
        %v1080 = vunpack.c.l.b16 %v1036
        %v1081 = vunpack.c.l.b16 %v1037
        %v1082 = vunpack.c.l.b16 %v1038
        %v1083 = vunpack.c.l.b16 %v1039
        %v1084 = vunpack.c.l.b16 %v1040
        %v1085 = vunpack.c.l.b16 %v1041
        %v1086 = vunpack.c.l.b16 %v1042
        %v1087 = vunpack.c.l.b16 %v1043
        %v1088 = vunpack.c.l.b16 %v1044
        %v1089 = vunpack.c.l.b16 %v1045
        %v1090 = vunpack.c.l.b16 %v1046
        %v1091 = vunpack.c.l.b16 %v1047
        %v1092 = vunpack.c.l.b16 %v1048
        %v1093 = vunpack.c.l.b16 %v1049
        %v1094 = vunpack.c.l.b16 %v1050
        %v1095 = vpack.c.b16 %v1080, %v1079
        %v1096 = vpack.c.b16 %v1082, %v1081
        %v1097 = vpack.c.b16 %v1084, %v1083
        %v1098 = vpack.c.b16 %v1086, %v1085
        %v1099 = vpack.c.b16 %v1088, %v1087
        %v1100 = vpack.c.b16 %v1090, %v1089
        %v1101 = vpack.c.b16 %v1092, %v1091
        %v1102 = vpack.c.b16 %v1094, %v1093
        %1111 = vmatprep.subr.bf16.mxu0 0
        %1112 = vmatpush1.bf16.msra.mxu0 %v1095
        %1113 = vmatprep.subr.bf16.mxu0 0
        %1114 = vmatpush1.bf16.msra.mxu0 %v1096
        %1115 = vmatprep.subr.bf16.mxu0 0
        %1116 = vmatpush1.bf16.msra.mxu0 %v1097
        %1117 = vmatprep.subr.bf16.mxu0 0
        %1118 = vmatpush1.bf16.msra.mxu0 %v1098
        %1119 = vmatprep.subr.bf16.mxu0 0
        %1120 = vmatpush1.bf16.msra.mxu0 %v1099
        %1121 = vmatprep.subr.bf16.mxu0 0
        %1122 = vmatpush1.bf16.msra.mxu0 %v1100
        %1123 = vmatprep.subr.bf16.mxu0 0
        %1124 = vmatpush1.bf16.msra.mxu0 %v1101
        %1125 = vmatprep.subr.bf16.mxu0 0
        %1126 = vmatpush1.bf16.msra.mxu0 %v1102
        %1127 = vmatprep.subr.bf16.mxu0 0
        %1128 = vmatpush1.bf16.msra.mxu0 0
        %1129 = vmatprep.subr.bf16.mxu0 0
        %1130 = vmatpush1.bf16.msra.mxu0 0
        %1131 = vmatprep.subr.bf16.mxu0 0
        %1132 = vmatpush1.bf16.msra.mxu0 0
        %1133 = vmatprep.subr.bf16.mxu0 0
        %1134 = vmatpush1.bf16.msra.mxu0 0
        %1135 = vmatprep.subr.bf16.mxu0 0
        %1136 = vmatpush1.bf16.msra.mxu0 0
        %1137 = vmatprep.subr.bf16.mxu0 0
        %1138 = vmatpush1.bf16.msra.mxu0 0
        %1139 = vmatprep.subr.bf16.mxu0 0
        %1140 = vmatpush1.bf16.msra.mxu0 0
        %1141 = vmatprep.subr.bf16.mxu0 0
        %1142 = vmatpush1.bf16.msra.mxu0 0
        %1143 = vmatprep.mubr.bf16.mxu0 0
        %1144 = vmatmul.mubr.bf16.gmra.mrb[0].mxu0 %v1051
        %v1145 = vpop.f32.mrb[0].mxu0
        %v1146 = vadd.f32 %v1062, %v1145
        %v1147 = vpop.f32.mrb[0].mxu0
        %v1148 = vpop.f32.mrb[0].mxu0
        %v1149 = vadd.f32 %v1062, %v1148
        %v1150 = vpop.f32.mrb[0].mxu0
        %1151 = vmatprep.mubr.bf16.mxu0 0
        %1152 = vmatmul.mubr.bf16.gmra.mrb[0].mxu0 %v1052
        %v1153 = vpop.f32.mrb[0].mxu0
        %v1154 = vadd.f32 %v1062, %v1153
        %v1155 = vpop.f32.mrb[0].mxu0
        %v1156 = vpop.f32.mrb[0].mxu0
        %v1157 = vadd.f32 %v1062, %v1156
        %v1158 = vpop.f32.mrb[0].mxu0
        %1159 = vmatprep.mubr.bf16.mxu0 0
        %1160 = vmatmul.mubr.bf16.gmra.mrb[0].mxu0 %v1053
        %v1161 = vpop.f32.mrb[0].mxu0
        %v1162 = vadd.f32 %v1062, %v1161
        %v1163 = vpop.f32.mrb[0].mxu0
        %v1164 = vpop.f32.mrb[0].mxu0
        %v1165 = vadd.f32 %v1062, %v1164
        %v1166 = vpop.f32.mrb[0].mxu0
        %1167 = vmatprep.mubr.bf16.mxu0 0
        %1168 = vmatmul.mubr.bf16.gmra.mrb[0].mxu0 %v1054
        %v1169 = vpop.f32.mrb[0].mxu0
        %v1170 = vadd.f32 %v1062, %v1169
        %v1171 = vpop.f32.mrb[0].mxu0
        %v1172 = vpop.f32.mrb[0].mxu0
        %v1173 = vadd.f32 %v1062, %v1172
        %v1174 = vpop.f32.mrb[0].mxu0
        %1175 = vmatprep.mubr.bf16.mxu0 0
        %1176 = vmatmul.mubr.bf16.gmra.mrb[0].mxu0 %v1055
        %v1177 = vpop.f32.mrb[0].mxu0
        %v1178 = vadd.f32 %v1062, %v1177
        %v1179 = vpop.f32.mrb[0].mxu0
        %v1180 = vpop.f32.mrb[0].mxu0
        %v1181 = vadd.f32 %v1062, %v1180
        %v1182 = vpop.f32.mrb[0].mxu0
        %1183 = vmatprep.mubr.bf16.mxu0 0
        %1184 = vmatmul.mubr.bf16.gmra.mrb[0].mxu0 %v1056
        %v1185 = vpop.f32.mrb[0].mxu0
        %v1186 = vadd.f32 %v1062, %v1185
        %v1187 = vpop.f32.mrb[0].mxu0
        %v1188 = vpop.f32.mrb[0].mxu0
        %v1189 = vadd.f32 %v1062, %v1188
        %v1190 = vpop.f32.mrb[0].mxu0
        %1191 = vmatprep.mubr.bf16.mxu0 0
        %1192 = vmatmul.mubr.bf16.gmra.mrb[0].mxu0 %v1057
        %v1193 = vpop.f32.mrb[0].mxu0
        %v1194 = vadd.f32 %v1062, %v1193
        %v1195 = vpop.f32.mrb[0].mxu0
        %v1196 = vpop.f32.mrb[0].mxu0
        %v1197 = vadd.f32 %v1062, %v1196
        %v1198 = vpop.f32.mrb[0].mxu0
        %1199 = vmatprep.mubr.bf16.mxu0 0
        %1200 = vmatmul.mubr.bf16.gmra.mrb[0].mxu0 %v1058
        %v1201 = vpop.f32.mrb[0].mxu0
        %v1202 = vadd.f32 %v1062, %v1201
        %v1203 = vpop.f32.mrb[0].mxu0
        %v1204 = vpop.f32.mrb[0].mxu0
        %v1205 = vadd.f32 %v1062, %v1204
        %v1206 = vpop.f32.mrb[0].mxu0
        %1207 = vdwg.mxu0
        %v1208 = vld [vmem:[%s433] sm:$0xff]
        %v1209 = vld [vmem:[%s433 + $0x8] sm:$0xff]
        %v1210 = vld [vmem:[%s433 + $0x10] sm:$0xff]
        %v1211 = vld [vmem:[%s433 + $0x18] sm:$0xff]
        %v1212 = vld [vmem:[%s433 + $0x20] sm:$0xff]
        %v1213 = vld [vmem:[%s433 + $0x28] sm:$0xff]
        %v1214 = vld [vmem:[%s433 + $0x30] sm:$0xff]
        %v1215 = vld [vmem:[%s433 + $0x38] sm:$0xff]
        %v1216 = vld [vmem:[%s433 + $0x40] sm:$0xff]
        %v1217 = vld [vmem:[%s433 + $0x48] sm:$0xff]
        %v1218 = vld [vmem:[%s433 + $0x50] sm:$0xff]
        %v1219 = vld [vmem:[%s433 + $0x58] sm:$0xff]
        %v1220 = vld [vmem:[%s433 + $0x60] sm:$0xff]
        %v1221 = vld [vmem:[%s433 + $0x68] sm:$0xff]
        %v1222 = vld [vmem:[%s433 + $0x70] sm:$0xff]
        %v1223 = vld [vmem:[%s433 + $0x78] sm:$0xff]
        %v1224 = vlaneseq
        %v1225 = vand.u32 %v1224, 127
        %1226 = vset.pattern.permute.xlu0 0
        %1227 = vperm.xlu0 %1226, %v1208
        %v1228 = vpop.permute.xlu0 %1227
        %1229 = vset.pattern.permute.xlu0 0
        %1230 = vperm.xlu0 %1229, %v1209
        %v1231 = vpop.permute.xlu0 %1230
        %1232 = vset.pattern.permute.xlu0 0
        %1233 = vperm.xlu0 %1232, %v1210
        %v1234 = vpop.permute.xlu0 %1233
        %1235 = vset.pattern.permute.xlu0 0
        %1236 = vperm.xlu0 %1235, %v1211
        %v1237 = vpop.permute.xlu0 %1236
        %1238 = vset.pattern.permute.xlu0 0
        %1239 = vperm.xlu0 %1238, %v1212
        %v1240 = vpop.permute.xlu0 %1239
        %1241 = vset.pattern.permute.xlu0 0
        %1242 = vperm.xlu0 %1241, %v1213
        %v1243 = vpop.permute.xlu0 %1242
        %1244 = vset.pattern.permute.xlu0 0
        %1245 = vperm.xlu0 %1244, %v1214
        %v1246 = vpop.permute.xlu0 %1245
        %1247 = vset.pattern.permute.xlu0 0
        %1248 = vperm.xlu0 %1247, %v1215
        %v1249 = vpop.permute.xlu0 %1248
        %1250 = vset.pattern.permute.xlu0 0
        %1251 = vperm.xlu0 %1250, %v1216
        %v1252 = vpop.permute.xlu0 %1251
        %1253 = vset.pattern.permute.xlu0 0
        %1254 = vperm.xlu0 %1253, %v1217
        %v1255 = vpop.permute.xlu0 %1254
        %1256 = vset.pattern.permute.xlu0 0
        %1257 = vperm.xlu0 %1256, %v1218
        %v1258 = vpop.permute.xlu0 %1257
        %1259 = vset.pattern.permute.xlu0 0
        %1260 = vperm.xlu0 %1259, %v1219
        %v1261 = vpop.permute.xlu0 %1260
        %1262 = vset.pattern.permute.xlu0 0
        %1263 = vperm.xlu0 %1262, %v1220
        %v1264 = vpop.permute.xlu0 %1263
        %1265 = vset.pattern.permute.xlu0 0
        %1266 = vperm.xlu0 %1265, %v1221
        %v1267 = vpop.permute.xlu0 %1266
        %1268 = vset.pattern.permute.xlu0 0
        %1269 = vperm.xlu0 %1268, %v1222
        %v1270 = vpop.permute.xlu0 %1269
        %1271 = vset.pattern.permute.xlu0 0
        %1272 = vperm.xlu0 %1271, %v1223
        %v1273 = vpop.permute.xlu0 %1272
        %vm1274 = vcmp.eq.s32.totalorder %v1225, %v1228
        %vm1275 = vcmp.eq.s32.totalorder %v1225, %v1231
        %vm1276 = vcmp.eq.s32.totalorder %v1225, %v1234
        %vm1277 = vcmp.eq.s32.totalorder %v1225, %v1237
        %vm1278 = vcmp.eq.s32.totalorder %v1225, %v1240
        %vm1279 = vcmp.eq.s32.totalorder %v1225, %v1243
        %vm1280 = vcmp.eq.s32.totalorder %v1225, %v1246
        %vm1281 = vcmp.eq.s32.totalorder %v1225, %v1249
        %vm1282 = vcmp.eq.s32.totalorder %v1225, %v1252
        %vm1283 = vcmp.eq.s32.totalorder %v1225, %v1255
        %vm1284 = vcmp.eq.s32.totalorder %v1225, %v1258
        %vm1285 = vcmp.eq.s32.totalorder %v1225, %v1261
        %vm1286 = vcmp.eq.s32.totalorder %v1225, %v1264
        %vm1287 = vcmp.eq.s32.totalorder %v1225, %v1267
        %vm1288 = vcmp.eq.s32.totalorder %v1225, %v1270
        %vm1289 = vcmp.eq.s32.totalorder %v1225, %v1273
        %1290 = vset.pattern.permute.xlu0 1
        %1291 = vperm.xlu0 %1290, %v1208
        %v1292 = vpop.permute.xlu0 %1291
        %1293 = vset.pattern.permute.xlu0 1
        %1294 = vperm.xlu0 %1293, %v1209
        %v1295 = vpop.permute.xlu0 %1294
        %1296 = vset.pattern.permute.xlu0 1
        %1297 = vperm.xlu0 %1296, %v1210
        %v1298 = vpop.permute.xlu0 %1297
        %1299 = vset.pattern.permute.xlu0 1
        %1300 = vperm.xlu0 %1299, %v1211
        %v1301 = vpop.permute.xlu0 %1300
        %1302 = vset.pattern.permute.xlu0 1
        %1303 = vperm.xlu0 %1302, %v1212
        %v1304 = vpop.permute.xlu0 %1303
        %1305 = vset.pattern.permute.xlu0 1
        %1306 = vperm.xlu0 %1305, %v1213
        %v1307 = vpop.permute.xlu0 %1306
        %1308 = vset.pattern.permute.xlu0 1
        %1309 = vperm.xlu0 %1308, %v1214
        %v1310 = vpop.permute.xlu0 %1309
        %1311 = vset.pattern.permute.xlu0 1
        %1312 = vperm.xlu0 %1311, %v1215
        %v1313 = vpop.permute.xlu0 %1312
        %1314 = vset.pattern.permute.xlu0 1
        %1315 = vperm.xlu0 %1314, %v1216
        %v1316 = vpop.permute.xlu0 %1315
        %1317 = vset.pattern.permute.xlu0 1
        %1318 = vperm.xlu0 %1317, %v1217
        %v1319 = vpop.permute.xlu0 %1318
        %1320 = vset.pattern.permute.xlu0 1
        %1321 = vperm.xlu0 %1320, %v1218
        %v1322 = vpop.permute.xlu0 %1321
        %1323 = vset.pattern.permute.xlu0 1
        %1324 = vperm.xlu0 %1323, %v1219
        %v1325 = vpop.permute.xlu0 %1324
        %1326 = vset.pattern.permute.xlu0 1
        %1327 = vperm.xlu0 %1326, %v1220
        %v1328 = vpop.permute.xlu0 %1327
        %1329 = vset.pattern.permute.xlu0 1
        %1330 = vperm.xlu0 %1329, %v1221
        %v1331 = vpop.permute.xlu0 %1330
        %1332 = vset.pattern.permute.xlu0 1
        %1333 = vperm.xlu0 %1332, %v1222
        %v1334 = vpop.permute.xlu0 %1333
        %1335 = vset.pattern.permute.xlu0 1
        %1336 = vperm.xlu0 %1335, %v1223
        %v1337 = vpop.permute.xlu0 %1336
        %vm1338 = vcmp.eq.s32.totalorder %v1225, %v1292
        %vm1339 = vcmp.eq.s32.totalorder %v1225, %v1295
        %vm1340 = vcmp.eq.s32.totalorder %v1225, %v1298
        %vm1341 = vcmp.eq.s32.totalorder %v1225, %v1301
        %vm1342 = vcmp.eq.s32.totalorder %v1225, %v1304
        %vm1343 = vcmp.eq.s32.totalorder %v1225, %v1307
        %vm1344 = vcmp.eq.s32.totalorder %v1225, %v1310
        %vm1345 = vcmp.eq.s32.totalorder %v1225, %v1313
        %vm1346 = vcmp.eq.s32.totalorder %v1225, %v1316
        %vm1347 = vcmp.eq.s32.totalorder %v1225, %v1319
        %vm1348 = vcmp.eq.s32.totalorder %v1225, %v1322
        %vm1349 = vcmp.eq.s32.totalorder %v1225, %v1325
        %vm1350 = vcmp.eq.s32.totalorder %v1225, %v1328
        %vm1351 = vcmp.eq.s32.totalorder %v1225, %v1331
        %vm1352 = vcmp.eq.s32.totalorder %v1225, %v1334
        %vm1353 = vcmp.eq.s32.totalorder %v1225, %v1337
        %vm1354 = vmor %vm1274, %vm1338
        %vm1355 = vmor %vm1275, %vm1339
        %vm1356 = vmor %vm1276, %vm1340
        %vm1357 = vmor %vm1277, %vm1341
        %vm1358 = vmor %vm1278, %vm1342
        %vm1359 = vmor %vm1279, %vm1343
        %vm1360 = vmor %vm1280, %vm1344
        %vm1361 = vmor %vm1281, %vm1345
        %vm1362 = vmor %vm1282, %vm1346
        %vm1363 = vmor %vm1283, %vm1347
        %vm1364 = vmor %vm1284, %vm1348
        %vm1365 = vmor %vm1285, %vm1349
        %vm1366 = vmor %vm1286, %vm1350
        %vm1367 = vmor %vm1287, %vm1351
        %vm1368 = vmor %vm1288, %vm1352
        %vm1369 = vmor %vm1289, %vm1353
        %1370 = vset.pattern.permute.xlu0 2
        %1371 = vperm.xlu0 %1370, %v1208
        %v1372 = vpop.permute.xlu0 %1371
        %1373 = vset.pattern.permute.xlu0 2
        %1374 = vperm.xlu0 %1373, %v1209
        %v1375 = vpop.permute.xlu0 %1374
        %1376 = vset.pattern.permute.xlu0 2
        %1377 = vperm.xlu0 %1376, %v1210
        %v1378 = vpop.permute.xlu0 %1377
        %1379 = vset.pattern.permute.xlu0 2
        %1380 = vperm.xlu0 %1379, %v1211
        %v1381 = vpop.permute.xlu0 %1380
        %1382 = vset.pattern.permute.xlu0 2
        %1383 = vperm.xlu0 %1382, %v1212
        %v1384 = vpop.permute.xlu0 %1383
        %1385 = vset.pattern.permute.xlu0 2
        %1386 = vperm.xlu0 %1385, %v1213
        %v1387 = vpop.permute.xlu0 %1386
        %1388 = vset.pattern.permute.xlu0 2
        %1389 = vperm.xlu0 %1388, %v1214
        %v1390 = vpop.permute.xlu0 %1389
        %1391 = vset.pattern.permute.xlu0 2
        %1392 = vperm.xlu0 %1391, %v1215
        %v1393 = vpop.permute.xlu0 %1392
        %1394 = vset.pattern.permute.xlu0 2
        %1395 = vperm.xlu0 %1394, %v1216
        %v1396 = vpop.permute.xlu0 %1395
        %1397 = vset.pattern.permute.xlu0 2
        %1398 = vperm.xlu0 %1397, %v1217
        %v1399 = vpop.permute.xlu0 %1398
        %1400 = vset.pattern.permute.xlu0 2
        %1401 = vperm.xlu0 %1400, %v1218
        %v1402 = vpop.permute.xlu0 %1401
        %1403 = vset.pattern.permute.xlu0 2
        %1404 = vperm.xlu0 %1403, %v1219
        %v1405 = vpop.permute.xlu0 %1404
        %1406 = vset.pattern.permute.xlu0 2
        %1407 = vperm.xlu0 %1406, %v1220
        %v1408 = vpop.permute.xlu0 %1407
        %1409 = vset.pattern.permute.xlu0 2
        %1410 = vperm.xlu0 %1409, %v1221
        %v1411 = vpop.permute.xlu0 %1410
        %1412 = vset.pattern.permute.xlu0 2
        %1413 = vperm.xlu0 %1412, %v1222
        %v1414 = vpop.permute.xlu0 %1413
        %1415 = vset.pattern.permute.xlu0 2
        %1416 = vperm.xlu0 %1415, %v1223
        %v1417 = vpop.permute.xlu0 %1416
        %vm1418 = vcmp.eq.s32.totalorder %v1225, %v1372
        %vm1419 = vcmp.eq.s32.totalorder %v1225, %v1375
        %vm1420 = vcmp.eq.s32.totalorder %v1225, %v1378
        %vm1421 = vcmp.eq.s32.totalorder %v1225, %v1381
        %vm1422 = vcmp.eq.s32.totalorder %v1225, %v1384
        %vm1423 = vcmp.eq.s32.totalorder %v1225, %v1387
        %vm1424 = vcmp.eq.s32.totalorder %v1225, %v1390
        %vm1425 = vcmp.eq.s32.totalorder %v1225, %v1393
        %vm1426 = vcmp.eq.s32.totalorder %v1225, %v1396
        %vm1427 = vcmp.eq.s32.totalorder %v1225, %v1399
        %vm1428 = vcmp.eq.s32.totalorder %v1225, %v1402
        %vm1429 = vcmp.eq.s32.totalorder %v1225, %v1405
        %vm1430 = vcmp.eq.s32.totalorder %v1225, %v1408
        %vm1431 = vcmp.eq.s32.totalorder %v1225, %v1411
        %vm1432 = vcmp.eq.s32.totalorder %v1225, %v1414
        %vm1433 = vcmp.eq.s32.totalorder %v1225, %v1417
        %vm1434 = vmor %vm1354, %vm1418
        %vm1435 = vmor %vm1355, %vm1419
        %vm1436 = vmor %vm1356, %vm1420
        %vm1437 = vmor %vm1357, %vm1421
        %vm1438 = vmor %vm1358, %vm1422
        %vm1439 = vmor %vm1359, %vm1423
        %vm1440 = vmor %vm1360, %vm1424
        %vm1441 = vmor %vm1361, %vm1425
        %vm1442 = vmor %vm1362, %vm1426
        %vm1443 = vmor %vm1363, %vm1427
        %vm1444 = vmor %vm1364, %vm1428
        %vm1445 = vmor %vm1365, %vm1429
        %vm1446 = vmor %vm1366, %vm1430
        %vm1447 = vmor %vm1367, %vm1431
        %vm1448 = vmor %vm1368, %vm1432
        %vm1449 = vmor %vm1369, %vm1433
        %1450 = vset.pattern.permute.xlu0 3
        %1451 = vperm.xlu0 %1450, %v1208
        %v1452 = vpop.permute.xlu0 %1451
        %1453 = vset.pattern.permute.xlu0 3
        %1454 = vperm.xlu0 %1453, %v1209
        %v1455 = vpop.permute.xlu0 %1454
        %1456 = vset.pattern.permute.xlu0 3
        %1457 = vperm.xlu0 %1456, %v1210
        %v1458 = vpop.permute.xlu0 %1457
        %1459 = vset.pattern.permute.xlu0 3
        %1460 = vperm.xlu0 %1459, %v1211
        %v1461 = vpop.permute.xlu0 %1460
        %1462 = vset.pattern.permute.xlu0 3
        %1463 = vperm.xlu0 %1462, %v1212
        %v1464 = vpop.permute.xlu0 %1463
        %1465 = vset.pattern.permute.xlu0 3
        %1466 = vperm.xlu0 %1465, %v1213
        %v1467 = vpop.permute.xlu0 %1466
        %1468 = vset.pattern.permute.xlu0 3
        %1469 = vperm.xlu0 %1468, %v1214
        %v1470 = vpop.permute.xlu0 %1469
        %1471 = vset.pattern.permute.xlu0 3
        %1472 = vperm.xlu0 %1471, %v1215
        %v1473 = vpop.permute.xlu0 %1472
        %1474 = vset.pattern.permute.xlu0 3
        %1475 = vperm.xlu0 %1474, %v1216
        %v1476 = vpop.permute.xlu0 %1475
        %1477 = vset.pattern.permute.xlu0 3
        %1478 = vperm.xlu0 %1477, %v1217
        %v1479 = vpop.permute.xlu0 %1478
        %1480 = vset.pattern.permute.xlu0 3
        %1481 = vperm.xlu0 %1480, %v1218
        %v1482 = vpop.permute.xlu0 %1481
        %1483 = vset.pattern.permute.xlu0 3
        %1484 = vperm.xlu0 %1483, %v1219
        %v1485 = vpop.permute.xlu0 %1484
        %1486 = vset.pattern.permute.xlu0 3
        %1487 = vperm.xlu0 %1486, %v1220
        %v1488 = vpop.permute.xlu0 %1487
        %1489 = vset.pattern.permute.xlu0 3
        %1490 = vperm.xlu0 %1489, %v1221
        %v1491 = vpop.permute.xlu0 %1490
        %1492 = vset.pattern.permute.xlu0 3
        %1493 = vperm.xlu0 %1492, %v1222
        %v1494 = vpop.permute.xlu0 %1493
        %1495 = vset.pattern.permute.xlu0 3
        %1496 = vperm.xlu0 %1495, %v1223
        %v1497 = vpop.permute.xlu0 %1496
        %vm1498 = vcmp.eq.s32.totalorder %v1225, %v1452
        %vm1499 = vcmp.eq.s32.totalorder %v1225, %v1455
        %vm1500 = vcmp.eq.s32.totalorder %v1225, %v1458
        %vm1501 = vcmp.eq.s32.totalorder %v1225, %v1461
        %vm1502 = vcmp.eq.s32.totalorder %v1225, %v1464
        %vm1503 = vcmp.eq.s32.totalorder %v1225, %v1467
        %vm1504 = vcmp.eq.s32.totalorder %v1225, %v1470
        %vm1505 = vcmp.eq.s32.totalorder %v1225, %v1473
        %vm1506 = vcmp.eq.s32.totalorder %v1225, %v1476
        %vm1507 = vcmp.eq.s32.totalorder %v1225, %v1479
        %vm1508 = vcmp.eq.s32.totalorder %v1225, %v1482
        %vm1509 = vcmp.eq.s32.totalorder %v1225, %v1485
        %vm1510 = vcmp.eq.s32.totalorder %v1225, %v1488
        %vm1511 = vcmp.eq.s32.totalorder %v1225, %v1491
        %vm1512 = vcmp.eq.s32.totalorder %v1225, %v1494
        %vm1513 = vcmp.eq.s32.totalorder %v1225, %v1497
        %vm1514 = vmor %vm1434, %vm1498
        %vm1515 = vmor %vm1435, %vm1499
        %vm1516 = vmor %vm1436, %vm1500
        %vm1517 = vmor %vm1437, %vm1501
        %vm1518 = vmor %vm1438, %vm1502
        %vm1519 = vmor %vm1439, %vm1503
        %vm1520 = vmor %vm1440, %vm1504
        %vm1521 = vmor %vm1441, %vm1505
        %vm1522 = vmor %vm1442, %vm1506
        %vm1523 = vmor %vm1443, %vm1507
        %vm1524 = vmor %vm1444, %vm1508
        %vm1525 = vmor %vm1445, %vm1509
        %vm1526 = vmor %vm1446, %vm1510
        %vm1527 = vmor %vm1447, %vm1511
        %vm1528 = vmor %vm1448, %vm1512
        %vm1529 = vmor %vm1449, %vm1513
        %v1530 = vsel %vm1514, 1.0, 0.0
        %v1531 = vsel %vm1515, 1.0, 0.0
        %v1532 = vsel %vm1516, 1.0, 0.0
        %v1533 = vsel %vm1517, 1.0, 0.0
        %v1534 = vsel %vm1518, 1.0, 0.0
        %v1535 = vsel %vm1519, 1.0, 0.0
        %v1536 = vsel %vm1520, 1.0, 0.0
        %v1537 = vsel %vm1521, 1.0, 0.0
        %v1538 = vsel %vm1522, 1.0, 0.0
        %v1539 = vsel %vm1523, 1.0, 0.0
        %v1540 = vsel %vm1524, 1.0, 0.0
        %v1541 = vsel %vm1525, 1.0, 0.0
        %v1542 = vsel %vm1526, 1.0, 0.0
        %v1543 = vsel %vm1527, 1.0, 0.0
        %v1544 = vsel %vm1528, 1.0, 0.0
        %v1545 = vsel %vm1529, 1.0, 0.0
        %v1546 = vpack.c.bf16 %v1531, %v1530
        %v1547 = vpack.c.bf16 %v1533, %v1532
        %v1548 = vpack.c.bf16 %v1535, %v1534
        %v1549 = vpack.c.bf16 %v1537, %v1536
        %v1550 = vpack.c.bf16 %v1539, %v1538
        %v1551 = vpack.c.bf16 %v1541, %v1540
        %v1552 = vpack.c.bf16 %v1543, %v1542
        %v1553 = vpack.c.bf16 %v1545, %v1544
        %v1554 = vld [vmem:[%s5] sm:$0xf]
        %v1555 = vld [vmem:[%s5 + $0x4] sm:$0xf]
        %v1556 = vld [vmem:[%s5 + $0x8] sm:$0xf]
        %v1557 = vld [vmem:[%s5 + $0xc] sm:$0xf]
        %v1558 = vld [vmem:[%s5 + $0x10] sm:$0xf]
        %v1559 = vld [vmem:[%s5 + $0x14] sm:$0xf]
        %v1560 = vld [vmem:[%s5 + $0x18] sm:$0xf]
        %v1561 = vld [vmem:[%s5 + $0x1c] sm:$0xf]
        %v1570 = vunpack.c.l.b16 %v1554
        %v1571 = vunpack.c.l.b16 %v1555
        %v1572 = vunpack.c.l.b16 %v1556
        %v1573 = vunpack.c.l.b16 %v1557
        %v1574 = vunpack.c.l.b16 %v1558
        %v1575 = vunpack.c.l.b16 %v1559
        %v1576 = vunpack.c.l.b16 %v1560
        %v1577 = vunpack.c.l.b16 %v1561
        %v1578 = vpack.c.b16 %v1571, %v1570
        %v1579 = vpack.c.b16 %v1573, %v1572
        %v1580 = vpack.c.b16 %v1575, %v1574
        %v1581 = vpack.c.b16 %v1577, %v1576
        %vm1586 = vcmask 523264
        %v1588 = vsel %vm1586, %v1546, 0
        %v1591 = vsel %vm1586, %v1547, 0
        %v1594 = vsel %vm1586, %v1548, 0
        %v1597 = vsel %vm1586, %v1549, 0
        %v1600 = vsel %vm1586, %v1550, 0
        %v1603 = vsel %vm1586, %v1551, 0
        %v1606 = vsel %vm1586, %v1552, 0
        %v1609 = vsel %vm1586, %v1553, 0
        %1611 = vmatprep.subr.bf16.mxu0 0
        %1612 = vmatpush1.bf16.msra.mxu0 %v1578
        %1613 = vmatprep.subr.bf16.mxu0 0
        %1614 = vmatpush1.bf16.msra.mxu0 %v1579
        %1615 = vmatprep.subr.bf16.mxu0 0
        %1616 = vmatpush1.bf16.msra.mxu0 %v1580
        %1617 = vmatprep.subr.bf16.mxu0 0
        %1618 = vmatpush1.bf16.msra.mxu0 %v1581
        %1619 = vmatprep.subr.bf16.mxu0 0
        %1620 = vmatpush1.bf16.msra.mxu0 0
        %1621 = vmatprep.subr.bf16.mxu0 0
        %1622 = vmatpush1.bf16.msra.mxu0 0
        %1623 = vmatprep.subr.bf16.mxu0 0
        %1624 = vmatpush1.bf16.msra.mxu0 0
        %1625 = vmatprep.subr.bf16.mxu0 0
        %1626 = vmatpush1.bf16.msra.mxu0 0
        %1627 = vmatprep.subr.bf16.mxu0 0
        %1628 = vmatpush1.bf16.msra.mxu0 0
        %1629 = vmatprep.subr.bf16.mxu0 0
        %1630 = vmatpush1.bf16.msra.mxu0 0
        %1631 = vmatprep.subr.bf16.mxu0 0
        %1632 = vmatpush1.bf16.msra.mxu0 0
        %1633 = vmatprep.subr.bf16.mxu0 0
        %1634 = vmatpush1.bf16.msra.mxu0 0
        %1635 = vmatprep.subr.bf16.mxu0 0
        %1636 = vmatpush1.bf16.msra.mxu0 0
        %1637 = vmatprep.subr.bf16.mxu0 0
        %1638 = vmatpush1.bf16.msra.mxu0 0
        %1639 = vmatprep.subr.bf16.mxu0 0
        %1640 = vmatpush1.bf16.msra.mxu0 0
        %1641 = vmatprep.subr.bf16.mxu0 0
        %1642 = vmatpush1.bf16.msra.mxu0 0
        %1643 = vmatprep.mubr.bf16.mxu0 0
        %1644 = vmatmul.mubr.bf16.gmra.mrb[0].mxu0 %v1588
        %v1645 = vpop.f32.mrb[0].mxu0
        %v1646 = vadd.f32 0.0, %v1645
        %v1647 = vpop.f32.mrb[0].mxu0
        %v1648 = vpop.f32.mrb[0].mxu0
        %v1649 = vadd.f32 0.0, %v1648
        %v1650 = vpop.f32.mrb[0].mxu0
        %1651 = vmatprep.mubr.bf16.mxu0 0
        %1652 = vmatmul.mubr.bf16.gmra.mrb[0].mxu0 %v1591
        %v1653 = vpop.f32.mrb[0].mxu0
        %v1654 = vadd.f32 0.0, %v1653
        %v1655 = vpop.f32.mrb[0].mxu0
        %v1656 = vpop.f32.mrb[0].mxu0
        %v1657 = vadd.f32 0.0, %v1656
        %v1658 = vpop.f32.mrb[0].mxu0
        %1659 = vmatprep.mubr.bf16.mxu0 0
        %1660 = vmatmul.mubr.bf16.gmra.mrb[0].mxu0 %v1594
        %v1661 = vpop.f32.mrb[0].mxu0
        %v1662 = vadd.f32 0.0, %v1661
        %v1663 = vpop.f32.mrb[0].mxu0
        %v1664 = vpop.f32.mrb[0].mxu0
        %v1665 = vadd.f32 0.0, %v1664
        %v1666 = vpop.f32.mrb[0].mxu0
        %1667 = vmatprep.mubr.bf16.mxu0 0
        %1668 = vmatmul.mubr.bf16.gmra.mrb[0].mxu0 %v1597
        %v1669 = vpop.f32.mrb[0].mxu0
        %v1670 = vadd.f32 0.0, %v1669
        %v1671 = vpop.f32.mrb[0].mxu0
        %v1672 = vpop.f32.mrb[0].mxu0
        %v1673 = vadd.f32 0.0, %v1672
        %v1674 = vpop.f32.mrb[0].mxu0
        %1675 = vmatprep.mubr.bf16.mxu0 0
        %1676 = vmatmul.mubr.bf16.gmra.mrb[0].mxu0 %v1600
        %v1677 = vpop.f32.mrb[0].mxu0
        %v1678 = vadd.f32 0.0, %v1677
        %v1679 = vpop.f32.mrb[0].mxu0
        %v1680 = vpop.f32.mrb[0].mxu0
        %v1681 = vadd.f32 0.0, %v1680
        %v1682 = vpop.f32.mrb[0].mxu0
        %1683 = vmatprep.mubr.bf16.mxu0 0
        %1684 = vmatmul.mubr.bf16.gmra.mrb[0].mxu0 %v1603
        %v1685 = vpop.f32.mrb[0].mxu0
        %v1686 = vadd.f32 0.0, %v1685
        %v1687 = vpop.f32.mrb[0].mxu0
        %v1688 = vpop.f32.mrb[0].mxu0
        %v1689 = vadd.f32 0.0, %v1688
        %v1690 = vpop.f32.mrb[0].mxu0
        %1691 = vmatprep.mubr.bf16.mxu0 0
        %1692 = vmatmul.mubr.bf16.gmra.mrb[0].mxu0 %v1606
        %v1693 = vpop.f32.mrb[0].mxu0
        %v1694 = vadd.f32 0.0, %v1693
        %v1695 = vpop.f32.mrb[0].mxu0
        %v1696 = vpop.f32.mrb[0].mxu0
        %v1697 = vadd.f32 0.0, %v1696
        %v1698 = vpop.f32.mrb[0].mxu0
        %1699 = vmatprep.mubr.bf16.mxu0 0
        %1700 = vmatmul.mubr.bf16.gmra.mrb[0].mxu0 %v1609
        %v1701 = vpop.f32.mrb[0].mxu0
        %v1702 = vadd.f32 0.0, %v1701
        %v1703 = vpop.f32.mrb[0].mxu0
        %v1704 = vpop.f32.mrb[0].mxu0
        %v1705 = vadd.f32 0.0, %v1704
        %v1706 = vpop.f32.mrb[0].mxu0
        %1707 = vdwg.mxu0
        %v1708 = vld [vmem:[%s8] sm:$0xf]
        %v1709 = vld [vmem:[%s8 + $0x4] sm:$0xf]
        %v1710 = vld [vmem:[%s8 + $0x8] sm:$0xf]
        %v1711 = vld [vmem:[%s8 + $0xc] sm:$0xf]
        %v1712 = vld [vmem:[%s8 + $0x10] sm:$0xf]
        %v1713 = vld [vmem:[%s8 + $0x14] sm:$0xf]
        %v1714 = vld [vmem:[%s8 + $0x18] sm:$0xf]
        %v1715 = vld [vmem:[%s8 + $0x1c] sm:$0xf]
        %v1716 = vld [vmem:[%s8 + $0x20] sm:$0xf]
        %v1717 = vld [vmem:[%s8 + $0x24] sm:$0xf]
        %v1718 = vld [vmem:[%s8 + $0x28] sm:$0xf]
        %v1719 = vld [vmem:[%s8 + $0x2c] sm:$0xf]
        %v1720 = vld [vmem:[%s8 + $0x30] sm:$0xf]
        %v1721 = vld [vmem:[%s8 + $0x34] sm:$0xf]
        %v1722 = vld [vmem:[%s8 + $0x38] sm:$0xf]
        %v1723 = vld [vmem:[%s8 + $0x3c] sm:$0xf]
        %v1724 = vpack.c.bf16 %v1649, %v1646
        %v1725 = vpack.c.bf16 %v1657, %v1654
        %v1726 = vpack.c.bf16 %v1665, %v1662
        %v1727 = vpack.c.bf16 %v1673, %v1670
        %v1728 = vpack.c.bf16 %v1681, %v1678
        %v1729 = vpack.c.bf16 %v1689, %v1686
        %v1730 = vpack.c.bf16 %v1697, %v1694
        %v1731 = vpack.c.bf16 %v1705, %v1702
        %v1732 = vld [vmem:[%s9] sm:$0xf]
        %v1733 = vld [vmem:[%s9 + $0x4] sm:$0xf]
        %v1734 = vld [vmem:[%s9 + $0x8] sm:$0xf]
        %v1735 = vld [vmem:[%s9 + $0xc] sm:$0xf]
        %v1736 = vld [vmem:[%s9 + $0x10] sm:$0xf]
        %v1737 = vld [vmem:[%s9 + $0x14] sm:$0xf]
        %v1738 = vld [vmem:[%s9 + $0x18] sm:$0xf]
        %v1739 = vld [vmem:[%s9 + $0x1c] sm:$0xf]
        %v1740 = vld [vmem:[%s9 + $0x20] sm:$0xf]
        %v1741 = vld [vmem:[%s9 + $0x24] sm:$0xf]
        %v1742 = vld [vmem:[%s9 + $0x28] sm:$0xf]
        %v1743 = vld [vmem:[%s9 + $0x2c] sm:$0xf]
        %v1744 = vld [vmem:[%s9 + $0x30] sm:$0xf]
        %v1745 = vld [vmem:[%s9 + $0x34] sm:$0xf]
        %v1746 = vld [vmem:[%s9 + $0x38] sm:$0xf]
        %v1747 = vld [vmem:[%s9 + $0x3c] sm:$0xf]
        %v1748 = vpack.c.bf16 %v1149, %v1146
        %v1749 = vpack.c.bf16 %v1157, %v1154
        %v1750 = vpack.c.bf16 %v1165, %v1162
        %v1751 = vpack.c.bf16 %v1173, %v1170
        %v1752 = vpack.c.bf16 %v1181, %v1178
        %v1753 = vpack.c.bf16 %v1189, %v1186
        %v1754 = vpack.c.bf16 %v1197, %v1194
        %v1755 = vpack.c.bf16 %v1205, %v1202
        %v1772 = vunpack.c.l.b16 %v1732
        %v1773 = vunpack.c.l.b16 %v1733
        %v1774 = vunpack.c.l.b16 %v1734
        %v1775 = vunpack.c.l.b16 %v1735
        %v1776 = vunpack.c.l.b16 %v1736
        %v1777 = vunpack.c.l.b16 %v1737
        %v1778 = vunpack.c.l.b16 %v1738
        %v1779 = vunpack.c.l.b16 %v1739
        %v1780 = vunpack.c.l.b16 %v1740
        %v1781 = vunpack.c.l.b16 %v1741
        %v1782 = vunpack.c.l.b16 %v1742
        %v1783 = vunpack.c.l.b16 %v1743
        %v1784 = vunpack.c.l.b16 %v1744
        %v1785 = vunpack.c.l.b16 %v1745
        %v1786 = vunpack.c.l.b16 %v1746
        %v1787 = vunpack.c.l.b16 %v1747
        %v1788 = vpack.c.b16 %v1773, %v1772
        %v1789 = vpack.c.b16 %v1775, %v1774
        %v1790 = vpack.c.b16 %v1777, %v1776
        %v1791 = vpack.c.b16 %v1779, %v1778
        %v1792 = vpack.c.b16 %v1781, %v1780
        %v1793 = vpack.c.b16 %v1783, %v1782
        %v1794 = vpack.c.b16 %v1785, %v1784
        %v1795 = vpack.c.b16 %v1787, %v1786
        %1804 = vmatprep.subr.bf16.mxu0 0
        %1805 = vmatpush1.bf16.msra.mxu0 %v1788
        %1806 = vmatprep.subr.bf16.mxu0 0
        %1807 = vmatpush1.bf16.msra.mxu0 %v1789
        %1808 = vmatprep.subr.bf16.mxu0 0
        %1809 = vmatpush1.bf16.msra.mxu0 %v1790
        %1810 = vmatprep.subr.bf16.mxu0 0
        %1811 = vmatpush1.bf16.msra.mxu0 %v1791
        %1812 = vmatprep.subr.bf16.mxu0 0
        %1813 = vmatpush1.bf16.msra.mxu0 %v1792
        %1814 = vmatprep.subr.bf16.mxu0 0
        %1815 = vmatpush1.bf16.msra.mxu0 %v1793
        %1816 = vmatprep.subr.bf16.mxu0 0
        %1817 = vmatpush1.bf16.msra.mxu0 %v1794
        %1818 = vmatprep.subr.bf16.mxu0 0
        %1819 = vmatpush1.bf16.msra.mxu0 %v1795
        %1820 = vmatprep.subr.bf16.mxu0 0
        %1821 = vmatpush1.bf16.msra.mxu0 0
        %1822 = vmatprep.subr.bf16.mxu0 0
        %1823 = vmatpush1.bf16.msra.mxu0 0
        %1824 = vmatprep.subr.bf16.mxu0 0
        %1825 = vmatpush1.bf16.msra.mxu0 0
        %1826 = vmatprep.subr.bf16.mxu0 0
        %1827 = vmatpush1.bf16.msra.mxu0 0
        %1828 = vmatprep.subr.bf16.mxu0 0
        %1829 = vmatpush1.bf16.msra.mxu0 0
        %1830 = vmatprep.subr.bf16.mxu0 0
        %1831 = vmatpush1.bf16.msra.mxu0 0
        %1832 = vmatprep.subr.bf16.mxu0 0
        %1833 = vmatpush1.bf16.msra.mxu0 0
        %1834 = vmatprep.subr.bf16.mxu0 0
        %1835 = vmatpush1.bf16.msra.mxu0 0
        %1836 = vmatprep.mubr.bf16.mxu0 0
        %1837 = vmatmul.mubr.bf16.gmra.mrb[0].mxu0 %v1748
        %v1838 = vpop.f32.mrb[0].mxu0
        %v1839 = vadd.f32 0.0, %v1838
        %v1840 = vpop.f32.mrb[0].mxu0
        %v1841 = vpop.f32.mrb[0].mxu0
        %v1842 = vadd.f32 0.0, %v1841
        %v1843 = vpop.f32.mrb[0].mxu0
        %1844 = vmatprep.mubr.bf16.mxu0 0
        %1845 = vmatmul.mubr.bf16.gmra.mrb[0].mxu0 %v1749
        %v1846 = vpop.f32.mrb[0].mxu0
        %v1847 = vadd.f32 0.0, %v1846
        %v1848 = vpop.f32.mrb[0].mxu0
        %v1849 = vpop.f32.mrb[0].mxu0
        %v1850 = vadd.f32 0.0, %v1849
        %v1851 = vpop.f32.mrb[0].mxu0
        %1852 = vmatprep.mubr.bf16.mxu0 0
        %1853 = vmatmul.mubr.bf16.gmra.mrb[0].mxu0 %v1750
        %v1854 = vpop.f32.mrb[0].mxu0
        %v1855 = vadd.f32 0.0, %v1854
        %v1856 = vpop.f32.mrb[0].mxu0
        %v1857 = vpop.f32.mrb[0].mxu0
        %v1858 = vadd.f32 0.0, %v1857
        %v1859 = vpop.f32.mrb[0].mxu0
        %1860 = vmatprep.mubr.bf16.mxu0 0
        %1861 = vmatmul.mubr.bf16.gmra.mrb[0].mxu0 %v1751
        %v1862 = vpop.f32.mrb[0].mxu0
        %v1863 = vadd.f32 0.0, %v1862
        %v1864 = vpop.f32.mrb[0].mxu0
        %v1865 = vpop.f32.mrb[0].mxu0
        %v1866 = vadd.f32 0.0, %v1865
        %v1867 = vpop.f32.mrb[0].mxu0
        %1868 = vmatprep.mubr.bf16.mxu0 0
        %1869 = vmatmul.mubr.bf16.gmra.mrb[0].mxu0 %v1752
        %v1870 = vpop.f32.mrb[0].mxu0
        %v1871 = vadd.f32 0.0, %v1870
        %v1872 = vpop.f32.mrb[0].mxu0
        %v1873 = vpop.f32.mrb[0].mxu0
        %v1874 = vadd.f32 0.0, %v1873
        %v1875 = vpop.f32.mrb[0].mxu0
        %1876 = vmatprep.mubr.bf16.mxu0 0
        %1877 = vmatmul.mubr.bf16.gmra.mrb[0].mxu0 %v1753
        %v1878 = vpop.f32.mrb[0].mxu0
        %v1879 = vadd.f32 0.0, %v1878
        %v1880 = vpop.f32.mrb[0].mxu0
        %v1881 = vpop.f32.mrb[0].mxu0
        %v1882 = vadd.f32 0.0, %v1881
        %v1883 = vpop.f32.mrb[0].mxu0
        %1884 = vmatprep.mubr.bf16.mxu0 0
        %1885 = vmatmul.mubr.bf16.gmra.mrb[0].mxu0 %v1754
        %v1886 = vpop.f32.mrb[0].mxu0
        %v1887 = vadd.f32 0.0, %v1886
        %v1888 = vpop.f32.mrb[0].mxu0
        %v1889 = vpop.f32.mrb[0].mxu0
        %v1890 = vadd.f32 0.0, %v1889
        %v1891 = vpop.f32.mrb[0].mxu0
        %1892 = vmatprep.mubr.bf16.mxu0 0
        %1893 = vmatmul.mubr.bf16.gmra.mrb[0].mxu0 %v1755
        %v1894 = vpop.f32.mrb[0].mxu0
        %v1895 = vadd.f32 0.0, %v1894
        %v1896 = vpop.f32.mrb[0].mxu0
        %v1897 = vpop.f32.mrb[0].mxu0
        %v1898 = vadd.f32 0.0, %v1897
        %v1899 = vpop.f32.mrb[0].mxu0
        %1900 = vdwg.mxu0
        %v1917 = vunpack.c.l.b16 %v1708
        %v1918 = vunpack.c.l.b16 %v1709
        %v1919 = vunpack.c.l.b16 %v1710
        %v1920 = vunpack.c.l.b16 %v1711
        %v1921 = vunpack.c.l.b16 %v1712
        %v1922 = vunpack.c.l.b16 %v1713
        %v1923 = vunpack.c.l.b16 %v1714
        %v1924 = vunpack.c.l.b16 %v1715
        %v1925 = vunpack.c.l.b16 %v1716
        %v1926 = vunpack.c.l.b16 %v1717
        %v1927 = vunpack.c.l.b16 %v1718
        %v1928 = vunpack.c.l.b16 %v1719
        %v1929 = vunpack.c.l.b16 %v1720
        %v1930 = vunpack.c.l.b16 %v1721
        %v1931 = vunpack.c.l.b16 %v1722
        %v1932 = vunpack.c.l.b16 %v1723
        %v1933 = vpack.c.b16 %v1918, %v1917
        %v1934 = vpack.c.b16 %v1920, %v1919
        %v1935 = vpack.c.b16 %v1922, %v1921
        %v1936 = vpack.c.b16 %v1924, %v1923
        %v1937 = vpack.c.b16 %v1926, %v1925
        %v1938 = vpack.c.b16 %v1928, %v1927
        %v1939 = vpack.c.b16 %v1930, %v1929
        %v1940 = vpack.c.b16 %v1932, %v1931
        %1949 = vmatprep.subr.bf16.mxu0 0
        %1950 = vmatpush1.bf16.msra.mxu0 %v1933
        %1951 = vmatprep.subr.bf16.mxu0 0
        %1952 = vmatpush1.bf16.msra.mxu0 %v1934
        %1953 = vmatprep.subr.bf16.mxu0 0
        %1954 = vmatpush1.bf16.msra.mxu0 %v1935
        %1955 = vmatprep.subr.bf16.mxu0 0
        %1956 = vmatpush1.bf16.msra.mxu0 %v1936
        %1957 = vmatprep.subr.bf16.mxu0 0
        %1958 = vmatpush1.bf16.msra.mxu0 %v1937
        %1959 = vmatprep.subr.bf16.mxu0 0
        %1960 = vmatpush1.bf16.msra.mxu0 %v1938
        %1961 = vmatprep.subr.bf16.mxu0 0
        %1962 = vmatpush1.bf16.msra.mxu0 %v1939
        %1963 = vmatprep.subr.bf16.mxu0 0
        %1964 = vmatpush1.bf16.msra.mxu0 %v1940
        %1965 = vmatprep.subr.bf16.mxu0 0
        %1966 = vmatpush1.bf16.msra.mxu0 0
        %1967 = vmatprep.subr.bf16.mxu0 0
        %1968 = vmatpush1.bf16.msra.mxu0 0
        %1969 = vmatprep.subr.bf16.mxu0 0
        %1970 = vmatpush1.bf16.msra.mxu0 0
        %1971 = vmatprep.subr.bf16.mxu0 0
        %1972 = vmatpush1.bf16.msra.mxu0 0
        %1973 = vmatprep.subr.bf16.mxu0 0
        %1974 = vmatpush1.bf16.msra.mxu0 0
        %1975 = vmatprep.subr.bf16.mxu0 0
        %1976 = vmatpush1.bf16.msra.mxu0 0
        %1977 = vmatprep.subr.bf16.mxu0 0
        %1978 = vmatpush1.bf16.msra.mxu0 0
        %1979 = vmatprep.subr.bf16.mxu0 0
        %1980 = vmatpush1.bf16.msra.mxu0 0
        %1981 = vmatprep.mubr.bf16.mxu0 0
        %1982 = vmatmul.mubr.bf16.gmra.mrb[0].mxu0 %v1724
        %v1983 = vpop.f32.mrb[0].mxu0
        %v1984 = vadd.f32 %v1839, %v1983
        %v1985 = vpop.f32.mrb[0].mxu0
        %v1986 = vpop.f32.mrb[0].mxu0
        %v1987 = vadd.f32 %v1842, %v1986
        %v1988 = vpop.f32.mrb[0].mxu0
        %1989 = vmatprep.mubr.bf16.mxu0 0
        %1990 = vmatmul.mubr.bf16.gmra.mrb[0].mxu0 %v1725
        %v1991 = vpop.f32.mrb[0].mxu0
        %v1992 = vadd.f32 %v1847, %v1991
        %v1993 = vpop.f32.mrb[0].mxu0
        %v1994 = vpop.f32.mrb[0].mxu0
        %v1995 = vadd.f32 %v1850, %v1994
        %v1996 = vpop.f32.mrb[0].mxu0
        %1997 = vmatprep.mubr.bf16.mxu0 0
        %1998 = vmatmul.mubr.bf16.gmra.mrb[0].mxu0 %v1726
        %v1999 = vpop.f32.mrb[0].mxu0
        %v2000 = vadd.f32 %v1855, %v1999
        %v2001 = vpop.f32.mrb[0].mxu0
        %v2002 = vpop.f32.mrb[0].mxu0
        %v2003 = vadd.f32 %v1858, %v2002
        %v2004 = vpop.f32.mrb[0].mxu0
        %2005 = vmatprep.mubr.bf16.mxu0 0
        %2006 = vmatmul.mubr.bf16.gmra.mrb[0].mxu0 %v1727
        %v2007 = vpop.f32.mrb[0].mxu0
        %v2008 = vadd.f32 %v1863, %v2007
        %v2009 = vpop.f32.mrb[0].mxu0
        %v2010 = vpop.f32.mrb[0].mxu0
        %v2011 = vadd.f32 %v1866, %v2010
        %v2012 = vpop.f32.mrb[0].mxu0
        %2013 = vmatprep.mubr.bf16.mxu0 0
        %2014 = vmatmul.mubr.bf16.gmra.mrb[0].mxu0 %v1728
        %v2015 = vpop.f32.mrb[0].mxu0
        %v2016 = vadd.f32 %v1871, %v2015
        %v2017 = vpop.f32.mrb[0].mxu0
        %v2018 = vpop.f32.mrb[0].mxu0
        %v2019 = vadd.f32 %v1874, %v2018
        %v2020 = vpop.f32.mrb[0].mxu0
        %2021 = vmatprep.mubr.bf16.mxu0 0
        %2022 = vmatmul.mubr.bf16.gmra.mrb[0].mxu0 %v1729
        %v2023 = vpop.f32.mrb[0].mxu0
        %v2024 = vadd.f32 %v1879, %v2023
        %v2025 = vpop.f32.mrb[0].mxu0
        %v2026 = vpop.f32.mrb[0].mxu0
        %v2027 = vadd.f32 %v1882, %v2026
        %v2028 = vpop.f32.mrb[0].mxu0
        %2029 = vmatprep.mubr.bf16.mxu0 0
        %2030 = vmatmul.mubr.bf16.gmra.mrb[0].mxu0 %v1730
        %v2031 = vpop.f32.mrb[0].mxu0
        %v2032 = vadd.f32 %v1887, %v2031
        %v2033 = vpop.f32.mrb[0].mxu0
        %v2034 = vpop.f32.mrb[0].mxu0
        %v2035 = vadd.f32 %v1890, %v2034
        %v2036 = vpop.f32.mrb[0].mxu0
        %2037 = vmatprep.mubr.bf16.mxu0 0
        %2038 = vmatmul.mubr.bf16.gmra.mrb[0].mxu0 %v1731
        %v2039 = vpop.f32.mrb[0].mxu0
        %v2040 = vadd.f32 %v1895, %v2039
        %v2041 = vpop.f32.mrb[0].mxu0
        %v2042 = vpop.f32.mrb[0].mxu0
        %v2043 = vadd.f32 %v1898, %v2042
        %v2044 = vpop.f32.mrb[0].mxu0
        %2045 = vdwg.mxu0
        %v2046 = vlaneseq
        %v2047 = vshrl.u32 %v2046, 7
        %v2048 = vsub.s32 0, %v2047
        %v2049 = vrot.slane %v445, %v2048
        %v2050 = vadd.f32 %v1984, %v2049
        %v2051 = vadd.f32 %v1987, %v2049
        %v2052 = vadd.f32 %v1992, %v2049
        %v2053 = vadd.f32 %v1995, %v2049
        %v2054 = vadd.f32 %v2000, %v2049
        %v2055 = vadd.f32 %v2003, %v2049
        %v2056 = vadd.f32 %v2008, %v2049
        %v2057 = vadd.f32 %v2011, %v2049
        %v2058 = vadd.f32 %v2016, %v2049
        %v2059 = vadd.f32 %v2019, %v2049
        %v2060 = vadd.f32 %v2024, %v2049
        %v2061 = vadd.f32 %v2027, %v2049
        %v2062 = vadd.f32 %v2032, %v2049
        %v2063 = vadd.f32 %v2035, %v2049
        %v2064 = vadd.f32 %v2040, %v2049
        %v2065 = vadd.f32 %v2043, %v2049
        %v2066 = vmax.f32 %v2050, 0.0
        %v2067 = vmax.f32 %v2051, 0.0
        %v2068 = vmax.f32 %v2052, 0.0
        %v2069 = vmax.f32 %v2053, 0.0
        %v2070 = vmax.f32 %v2054, 0.0
        %v2071 = vmax.f32 %v2055, 0.0
        %v2072 = vmax.f32 %v2056, 0.0
        %v2073 = vmax.f32 %v2057, 0.0
        %v2074 = vmax.f32 %v2058, 0.0
        %v2075 = vmax.f32 %v2059, 0.0
        %v2076 = vmax.f32 %v2060, 0.0
        %v2077 = vmax.f32 %v2061, 0.0
        %v2078 = vmax.f32 %v2062, 0.0
        %v2079 = vmax.f32 %v2063, 0.0
        %v2080 = vmax.f32 %v2064, 0.0
        %v2081 = vmax.f32 %v2065, 0.0
        %v2082 = vld [vmem:[%s10] sm:$0xf]
        %v2083 = vld [vmem:[%s10 + $0x4] sm:$0xf]
        %v2084 = vld [vmem:[%s10 + $0x8] sm:$0xf]
        %v2085 = vld [vmem:[%s10 + $0xc] sm:$0xf]
        %v2086 = vld [vmem:[%s10 + $0x10] sm:$0xf]
        %v2087 = vld [vmem:[%s10 + $0x14] sm:$0xf]
        %v2088 = vld [vmem:[%s10 + $0x18] sm:$0xf]
        %v2089 = vld [vmem:[%s10 + $0x1c] sm:$0xf]
        %v2090 = vld [vmem:[%s10 + $0x20] sm:$0xf]
        %v2091 = vld [vmem:[%s10 + $0x24] sm:$0xf]
        %v2092 = vld [vmem:[%s10 + $0x28] sm:$0xf]
        %v2093 = vld [vmem:[%s10 + $0x2c] sm:$0xf]
        %v2094 = vld [vmem:[%s10 + $0x30] sm:$0xf]
        %v2095 = vld [vmem:[%s10 + $0x34] sm:$0xf]
        %v2096 = vld [vmem:[%s10 + $0x38] sm:$0xf]
        %v2097 = vld [vmem:[%s10 + $0x3c] sm:$0xf]
        %v2098 = vpack.c.bf16 %v2067, %v2066
        %v2099 = vpack.c.bf16 %v2069, %v2068
        %v2100 = vpack.c.bf16 %v2071, %v2070
        %v2101 = vpack.c.bf16 %v2073, %v2072
        %v2102 = vpack.c.bf16 %v2075, %v2074
        %v2103 = vpack.c.bf16 %v2077, %v2076
        %v2104 = vpack.c.bf16 %v2079, %v2078
        %v2105 = vpack.c.bf16 %v2081, %v2080
        %v2106 = vlaneseq
        %v2107 = vshrl.u32 %v2106, 7
        %v2108 = vsub.s32 1, %v2107
        %v2109 = vrot.slane %v445, %v2108
        %v2126 = vunpack.c.l.b16 %v2082
        %v2127 = vunpack.c.l.b16 %v2083
        %v2128 = vunpack.c.l.b16 %v2084
        %v2129 = vunpack.c.l.b16 %v2085
        %v2130 = vunpack.c.l.b16 %v2086
        %v2131 = vunpack.c.l.b16 %v2087
        %v2132 = vunpack.c.l.b16 %v2088
        %v2133 = vunpack.c.l.b16 %v2089
        %v2134 = vunpack.c.l.b16 %v2090
        %v2135 = vunpack.c.l.b16 %v2091
        %v2136 = vunpack.c.l.b16 %v2092
        %v2137 = vunpack.c.l.b16 %v2093
        %v2138 = vunpack.c.l.b16 %v2094
        %v2139 = vunpack.c.l.b16 %v2095
        %v2140 = vunpack.c.l.b16 %v2096
        %v2141 = vunpack.c.l.b16 %v2097
        %v2142 = vpack.c.b16 %v2127, %v2126
        %v2143 = vpack.c.b16 %v2129, %v2128
        %v2144 = vpack.c.b16 %v2131, %v2130
        %v2145 = vpack.c.b16 %v2133, %v2132
        %v2146 = vpack.c.b16 %v2135, %v2134
        %v2147 = vpack.c.b16 %v2137, %v2136
        %v2148 = vpack.c.b16 %v2139, %v2138
        %v2149 = vpack.c.b16 %v2141, %v2140
        %2158 = vmatprep.subr.bf16.mxu0 0
        %2159 = vmatpush1.bf16.msra.mxu0 %v2142
        %2160 = vmatprep.subr.bf16.mxu0 0
        %2161 = vmatpush1.bf16.msra.mxu0 %v2143
        %2162 = vmatprep.subr.bf16.mxu0 0
        %2163 = vmatpush1.bf16.msra.mxu0 %v2144
        %2164 = vmatprep.subr.bf16.mxu0 0
        %2165 = vmatpush1.bf16.msra.mxu0 %v2145
        %2166 = vmatprep.subr.bf16.mxu0 0
        %2167 = vmatpush1.bf16.msra.mxu0 %v2146
        %2168 = vmatprep.subr.bf16.mxu0 0
        %2169 = vmatpush1.bf16.msra.mxu0 %v2147
        %2170 = vmatprep.subr.bf16.mxu0 0
        %2171 = vmatpush1.bf16.msra.mxu0 %v2148
        %2172 = vmatprep.subr.bf16.mxu0 0
        %2173 = vmatpush1.bf16.msra.mxu0 %v2149
        %2174 = vmatprep.subr.bf16.mxu0 0
        %2175 = vmatpush1.bf16.msra.mxu0 0
        %2176 = vmatprep.subr.bf16.mxu0 0
        %2177 = vmatpush1.bf16.msra.mxu0 0
        %2178 = vmatprep.subr.bf16.mxu0 0
        %2179 = vmatpush1.bf16.msra.mxu0 0
        %2180 = vmatprep.subr.bf16.mxu0 0
        %2181 = vmatpush1.bf16.msra.mxu0 0
        %2182 = vmatprep.subr.bf16.mxu0 0
        %2183 = vmatpush1.bf16.msra.mxu0 0
        %2184 = vmatprep.subr.bf16.mxu0 0
        %2185 = vmatpush1.bf16.msra.mxu0 0
        %2186 = vmatprep.subr.bf16.mxu0 0
        %2187 = vmatpush1.bf16.msra.mxu0 0
        %2188 = vmatprep.subr.bf16.mxu0 0
        %2189 = vmatpush1.bf16.msra.mxu0 0
        %2190 = vmatprep.mubr.bf16.mxu0 0
        %2191 = vmatmul.mubr.bf16.gmra.mrb[0].mxu0 %v2098
        %v2192 = vpop.f32.mrb[0].mxu0
        %v2193 = vadd.f32 %v2109, %v2192
        %v2194 = vpop.f32.mrb[0].mxu0
        %v2195 = vpop.f32.mrb[0].mxu0
        %v2196 = vadd.f32 %v2109, %v2195
        %v2197 = vpop.f32.mrb[0].mxu0
        %2198 = vmatprep.mubr.bf16.mxu0 0
        %2199 = vmatmul.mubr.bf16.gmra.mrb[0].mxu0 %v2099
        %v2200 = vpop.f32.mrb[0].mxu0
        %v2201 = vadd.f32 %v2109, %v2200
        %v2202 = vpop.f32.mrb[0].mxu0
        %v2203 = vpop.f32.mrb[0].mxu0
        %v2204 = vadd.f32 %v2109, %v2203
        %v2205 = vpop.f32.mrb[0].mxu0
        %2206 = vmatprep.mubr.bf16.mxu0 0
        %2207 = vmatmul.mubr.bf16.gmra.mrb[0].mxu0 %v2100
        %v2208 = vpop.f32.mrb[0].mxu0
        %v2209 = vadd.f32 %v2109, %v2208
        %v2210 = vpop.f32.mrb[0].mxu0
        %v2211 = vpop.f32.mrb[0].mxu0
        %v2212 = vadd.f32 %v2109, %v2211
        %v2213 = vpop.f32.mrb[0].mxu0
        %2214 = vmatprep.mubr.bf16.mxu0 0
        %2215 = vmatmul.mubr.bf16.gmra.mrb[0].mxu0 %v2101
        %v2216 = vpop.f32.mrb[0].mxu0
        %v2217 = vadd.f32 %v2109, %v2216
        %v2218 = vpop.f32.mrb[0].mxu0
        %v2219 = vpop.f32.mrb[0].mxu0
        %v2220 = vadd.f32 %v2109, %v2219
        %v2221 = vpop.f32.mrb[0].mxu0
        %2222 = vmatprep.mubr.bf16.mxu0 0
        %2223 = vmatmul.mubr.bf16.gmra.mrb[0].mxu0 %v2102
        %v2224 = vpop.f32.mrb[0].mxu0
        %v2225 = vadd.f32 %v2109, %v2224
        %v2226 = vpop.f32.mrb[0].mxu0
        %v2227 = vpop.f32.mrb[0].mxu0
        %v2228 = vadd.f32 %v2109, %v2227
        %v2229 = vpop.f32.mrb[0].mxu0
        %2230 = vmatprep.mubr.bf16.mxu0 0
        %2231 = vmatmul.mubr.bf16.gmra.mrb[0].mxu0 %v2103
        %v2232 = vpop.f32.mrb[0].mxu0
        %v2233 = vadd.f32 %v2109, %v2232
        %v2234 = vpop.f32.mrb[0].mxu0
        %v2235 = vpop.f32.mrb[0].mxu0
        %v2236 = vadd.f32 %v2109, %v2235
        %v2237 = vpop.f32.mrb[0].mxu0
        %2238 = vmatprep.mubr.bf16.mxu0 0
        %2239 = vmatmul.mubr.bf16.gmra.mrb[0].mxu0 %v2104
        %v2240 = vpop.f32.mrb[0].mxu0
        %v2241 = vadd.f32 %v2109, %v2240
        %v2242 = vpop.f32.mrb[0].mxu0
        %v2243 = vpop.f32.mrb[0].mxu0
        %v2244 = vadd.f32 %v2109, %v2243
        %v2245 = vpop.f32.mrb[0].mxu0
        %2246 = vmatprep.mubr.bf16.mxu0 0
        %2247 = vmatmul.mubr.bf16.gmra.mrb[0].mxu0 %v2105
        %v2248 = vpop.f32.mrb[0].mxu0
        %v2249 = vadd.f32 %v2109, %v2248
        %v2250 = vpop.f32.mrb[0].mxu0
        %v2251 = vpop.f32.mrb[0].mxu0
        %v2252 = vadd.f32 %v2109, %v2251
        %v2253 = vpop.f32.mrb[0].mxu0
        %2254 = vdwg.mxu0
        %v2255 = vmax.f32 %v2193, 0.0
        %v2256 = vmax.f32 %v2196, 0.0
        %v2257 = vmax.f32 %v2201, 0.0
        %v2258 = vmax.f32 %v2204, 0.0
        %v2259 = vmax.f32 %v2209, 0.0
        %v2260 = vmax.f32 %v2212, 0.0
        %v2261 = vmax.f32 %v2217, 0.0
        %v2262 = vmax.f32 %v2220, 0.0
        %v2263 = vmax.f32 %v2225, 0.0
        %v2264 = vmax.f32 %v2228, 0.0
        %v2265 = vmax.f32 %v2233, 0.0
        %v2266 = vmax.f32 %v2236, 0.0
        %v2267 = vmax.f32 %v2241, 0.0
        %v2268 = vmax.f32 %v2244, 0.0
        %v2269 = vmax.f32 %v2249, 0.0
        %v2270 = vmax.f32 %v2252, 0.0
        %v2271 = vld [vmem:[%s11] sm:$0xf]
        %v2272 = vld [vmem:[%s11 + $0x4] sm:$0xf]
        %v2273 = vld [vmem:[%s11 + $0x8] sm:$0xf]
        %v2274 = vld [vmem:[%s11 + $0xc] sm:$0xf]
        %v2275 = vld [vmem:[%s11 + $0x10] sm:$0xf]
        %v2276 = vld [vmem:[%s11 + $0x14] sm:$0xf]
        %v2277 = vld [vmem:[%s11 + $0x18] sm:$0xf]
        %v2278 = vld [vmem:[%s11 + $0x1c] sm:$0xf]
        %v2279 = vld [vmem:[%s11 + $0x20] sm:$0xf]
        %v2280 = vld [vmem:[%s11 + $0x24] sm:$0xf]
        %v2281 = vld [vmem:[%s11 + $0x28] sm:$0xf]
        %v2282 = vld [vmem:[%s11 + $0x2c] sm:$0xf]
        %v2283 = vld [vmem:[%s11 + $0x30] sm:$0xf]
        %v2284 = vld [vmem:[%s11 + $0x34] sm:$0xf]
        %v2285 = vld [vmem:[%s11 + $0x38] sm:$0xf]
        %v2286 = vld [vmem:[%s11 + $0x3c] sm:$0xf]
        %v2287 = vpack.c.bf16 %v2256, %v2255
        %v2288 = vpack.c.bf16 %v2258, %v2257
        %v2289 = vpack.c.bf16 %v2260, %v2259
        %v2290 = vpack.c.bf16 %v2262, %v2261
        %v2291 = vpack.c.bf16 %v2264, %v2263
        %v2292 = vpack.c.bf16 %v2266, %v2265
        %v2293 = vpack.c.bf16 %v2268, %v2267
        %v2294 = vpack.c.bf16 %v2270, %v2269
        %v2295 = vlaneseq
        %v2296 = vshrl.u32 %v2295, 7
        %v2297 = vsub.s32 2, %v2296
        %v2298 = vrot.slane %v445, %v2297
        %v2315 = vunpack.c.l.b16 %v2271
        %v2316 = vunpack.c.l.b16 %v2272
        %v2317 = vunpack.c.l.b16 %v2273
        %v2318 = vunpack.c.l.b16 %v2274
        %v2319 = vunpack.c.l.b16 %v2275
        %v2320 = vunpack.c.l.b16 %v2276
        %v2321 = vunpack.c.l.b16 %v2277
        %v2322 = vunpack.c.l.b16 %v2278
        %v2323 = vunpack.c.l.b16 %v2279
        %v2324 = vunpack.c.l.b16 %v2280
        %v2325 = vunpack.c.l.b16 %v2281
        %v2326 = vunpack.c.l.b16 %v2282
        %v2327 = vunpack.c.l.b16 %v2283
        %v2328 = vunpack.c.l.b16 %v2284
        %v2329 = vunpack.c.l.b16 %v2285
        %v2330 = vunpack.c.l.b16 %v2286
        %v2331 = vpack.c.b16 %v2316, %v2315
        %v2332 = vpack.c.b16 %v2318, %v2317
        %v2333 = vpack.c.b16 %v2320, %v2319
        %v2334 = vpack.c.b16 %v2322, %v2321
        %v2335 = vpack.c.b16 %v2324, %v2323
        %v2336 = vpack.c.b16 %v2326, %v2325
        %v2337 = vpack.c.b16 %v2328, %v2327
        %v2338 = vpack.c.b16 %v2330, %v2329
        %2347 = vmatprep.subr.bf16.mxu0 0
        %2348 = vmatpush1.bf16.msra.mxu0 %v2331
        %2349 = vmatprep.subr.bf16.mxu0 0
        %2350 = vmatpush1.bf16.msra.mxu0 %v2332
        %2351 = vmatprep.subr.bf16.mxu0 0
        %2352 = vmatpush1.bf16.msra.mxu0 %v2333
        %2353 = vmatprep.subr.bf16.mxu0 0
        %2354 = vmatpush1.bf16.msra.mxu0 %v2334
        %2355 = vmatprep.subr.bf16.mxu0 0
        %2356 = vmatpush1.bf16.msra.mxu0 %v2335
        %2357 = vmatprep.subr.bf16.mxu0 0
        %2358 = vmatpush1.bf16.msra.mxu0 %v2336
        %2359 = vmatprep.subr.bf16.mxu0 0
        %2360 = vmatpush1.bf16.msra.mxu0 %v2337
        %2361 = vmatprep.subr.bf16.mxu0 0
        %2362 = vmatpush1.bf16.msra.mxu0 %v2338
        %2363 = vmatprep.subr.bf16.mxu0 0
        %2364 = vmatpush1.bf16.msra.mxu0 0
        %2365 = vmatprep.subr.bf16.mxu0 0
        %2366 = vmatpush1.bf16.msra.mxu0 0
        %2367 = vmatprep.subr.bf16.mxu0 0
        %2368 = vmatpush1.bf16.msra.mxu0 0
        %2369 = vmatprep.subr.bf16.mxu0 0
        %2370 = vmatpush1.bf16.msra.mxu0 0
        %2371 = vmatprep.subr.bf16.mxu0 0
        %2372 = vmatpush1.bf16.msra.mxu0 0
        %2373 = vmatprep.subr.bf16.mxu0 0
        %2374 = vmatpush1.bf16.msra.mxu0 0
        %2375 = vmatprep.subr.bf16.mxu0 0
        %2376 = vmatpush1.bf16.msra.mxu0 0
        %2377 = vmatprep.subr.bf16.mxu0 0
        %2378 = vmatpush1.bf16.msra.mxu0 0
        %2379 = vmatprep.mubr.bf16.mxu0 0
        %2380 = vmatmul.mubr.bf16.gmra.mrb[0].mxu0 %v2287
        %v2381 = vpop.f32.mrb[0].mxu0
        %v2382 = vadd.f32 %v2298, %v2381
        %v2383 = vpop.f32.mrb[0].mxu0
        %v2384 = vpop.f32.mrb[0].mxu0
        %v2385 = vadd.f32 %v2298, %v2384
        %v2386 = vpop.f32.mrb[0].mxu0
        %2387 = vmatprep.mubr.bf16.mxu0 0
        %2388 = vmatmul.mubr.bf16.gmra.mrb[0].mxu0 %v2288
        %v2389 = vpop.f32.mrb[0].mxu0
        %v2390 = vadd.f32 %v2298, %v2389
        %v2391 = vpop.f32.mrb[0].mxu0
        %v2392 = vpop.f32.mrb[0].mxu0
        %v2393 = vadd.f32 %v2298, %v2392
        %v2394 = vpop.f32.mrb[0].mxu0
        %2395 = vmatprep.mubr.bf16.mxu0 0
        %2396 = vmatmul.mubr.bf16.gmra.mrb[0].mxu0 %v2289
        %v2397 = vpop.f32.mrb[0].mxu0
        %v2398 = vadd.f32 %v2298, %v2397
        %v2399 = vpop.f32.mrb[0].mxu0
        %v2400 = vpop.f32.mrb[0].mxu0
        %v2401 = vadd.f32 %v2298, %v2400
        %v2402 = vpop.f32.mrb[0].mxu0
        %2403 = vmatprep.mubr.bf16.mxu0 0
        %2404 = vmatmul.mubr.bf16.gmra.mrb[0].mxu0 %v2290
        %v2405 = vpop.f32.mrb[0].mxu0
        %v2406 = vadd.f32 %v2298, %v2405
        %v2407 = vpop.f32.mrb[0].mxu0
        %v2408 = vpop.f32.mrb[0].mxu0
        %v2409 = vadd.f32 %v2298, %v2408
        %v2410 = vpop.f32.mrb[0].mxu0
        %2411 = vmatprep.mubr.bf16.mxu0 0
        %2412 = vmatmul.mubr.bf16.gmra.mrb[0].mxu0 %v2291
        %v2413 = vpop.f32.mrb[0].mxu0
        %v2414 = vadd.f32 %v2298, %v2413
        %v2415 = vpop.f32.mrb[0].mxu0
        %v2416 = vpop.f32.mrb[0].mxu0
        %v2417 = vadd.f32 %v2298, %v2416
        %v2418 = vpop.f32.mrb[0].mxu0
        %2419 = vmatprep.mubr.bf16.mxu0 0
        %2420 = vmatmul.mubr.bf16.gmra.mrb[0].mxu0 %v2292
        %v2421 = vpop.f32.mrb[0].mxu0
        %v2422 = vadd.f32 %v2298, %v2421
        %v2423 = vpop.f32.mrb[0].mxu0
        %v2424 = vpop.f32.mrb[0].mxu0
        %v2425 = vadd.f32 %v2298, %v2424
        %v2426 = vpop.f32.mrb[0].mxu0
        %2427 = vmatprep.mubr.bf16.mxu0 0
        %2428 = vmatmul.mubr.bf16.gmra.mrb[0].mxu0 %v2293
        %v2429 = vpop.f32.mrb[0].mxu0
        %v2430 = vadd.f32 %v2298, %v2429
        %v2431 = vpop.f32.mrb[0].mxu0
        %v2432 = vpop.f32.mrb[0].mxu0
        %v2433 = vadd.f32 %v2298, %v2432
        %v2434 = vpop.f32.mrb[0].mxu0
        %2435 = vmatprep.mubr.bf16.mxu0 0
        %2436 = vmatmul.mubr.bf16.gmra.mrb[0].mxu0 %v2294
        %v2437 = vpop.f32.mrb[0].mxu0
        %v2438 = vadd.f32 %v2298, %v2437
        %v2439 = vpop.f32.mrb[0].mxu0
        %v2440 = vpop.f32.mrb[0].mxu0
        %v2441 = vadd.f32 %v2298, %v2440
        %v2442 = vpop.f32.mrb[0].mxu0
        %2443 = vdwg.mxu0
        %v2444 = vlaneseq
        %v2445 = vshrl.u32 %v2444, 7
        %v2446 = vadd.s32 %v2445, 8
        %v2447 = vld [vmem:[%s437] sm:$0x1]
        %v2448 = vlaneseq
        %v2449 = vshrl.u32 %v2448, 7
        %v2450 = vsub.s32 0, %v2449
        %v2451 = vrot.slane %v2447, %v2450
        %vm2452 = vcmp.eq.s32.totalorder %v2445, %v2451
        %vm2453 = vcmp.eq.s32.totalorder %v2446, %v2451
        %v2454 = vsel %vm2452, 1.0, 0.0
        %v2455 = vsel %vm2453, 1.0, 0.0
        %v2456 = vpack.c.bf16 %v2455, %v2454
        %v2457 = vpack.c.bf16 %v2385, %v2382
        %v2458 = vpack.c.bf16 %v2393, %v2390
        %v2459 = vpack.c.bf16 %v2401, %v2398
        %v2460 = vpack.c.bf16 %v2409, %v2406
        %v2461 = vpack.c.bf16 %v2417, %v2414
        %v2462 = vpack.c.bf16 %v2425, %v2422
        %v2463 = vpack.c.bf16 %v2433, %v2430
        %v2464 = vpack.c.bf16 %v2441, %v2438
        %v2465 = vunpack.c.l.bf16 %v2457
        %v2466 = vunpack.c.h.bf16 %v2457
        %v2467 = vunpack.c.l.bf16 %v2458
        %v2468 = vunpack.c.h.bf16 %v2458
        %v2469 = vunpack.c.l.bf16 %v2459
        %v2470 = vunpack.c.h.bf16 %v2459
        %v2471 = vunpack.c.l.bf16 %v2460
        %v2472 = vunpack.c.h.bf16 %v2460
        %v2473 = vunpack.c.l.bf16 %v2461
        %v2474 = vunpack.c.h.bf16 %v2461
        %v2475 = vunpack.c.l.bf16 %v2462
        %v2476 = vunpack.c.h.bf16 %v2462
        %v2477 = vunpack.c.l.bf16 %v2463
        %v2478 = vunpack.c.h.bf16 %v2463
        %v2479 = vunpack.c.l.bf16 %v2464
        %v2480 = vunpack.c.h.bf16 %v2464
        %v2481 = vsub.f32 %v2382, %v2465
        %v2482 = vsub.f32 %v2385, %v2466
        %v2483 = vsub.f32 %v2390, %v2467
        %v2484 = vsub.f32 %v2393, %v2468
        %v2485 = vsub.f32 %v2398, %v2469
        %v2486 = vsub.f32 %v2401, %v2470
        %v2487 = vsub.f32 %v2406, %v2471
        %v2488 = vsub.f32 %v2409, %v2472
        %v2489 = vsub.f32 %v2414, %v2473
        %v2490 = vsub.f32 %v2417, %v2474
        %v2491 = vsub.f32 %v2422, %v2475
        %v2492 = vsub.f32 %v2425, %v2476
        %v2493 = vsub.f32 %v2430, %v2477
        %v2494 = vsub.f32 %v2433, %v2478
        %v2495 = vsub.f32 %v2438, %v2479
        %v2496 = vsub.f32 %v2441, %v2480
        %v2497 = vpack.c.bf16 %v2482, %v2481
        %v2498 = vpack.c.bf16 %v2484, %v2483
        %v2499 = vpack.c.bf16 %v2486, %v2485
        %v2500 = vpack.c.bf16 %v2488, %v2487
        %v2501 = vpack.c.bf16 %v2490, %v2489
        %v2502 = vpack.c.bf16 %v2492, %v2491
        %v2503 = vpack.c.bf16 %v2494, %v2493
        %v2504 = vpack.c.bf16 %v2496, %v2495
        %v2505 = vld [vmem:[#allocation2] sm:$0xff]
        %v2506 = vld [vmem:[#allocation2 + $0x8] sm:$0xff]
        %2507 = vmatprep.subr.bf16.mxu0 0
        %2508 = vmatpush1.bf16.msra.mxu0 %v2497
        %2509 = vmatprep.subr.bf16.mxu0 0
        %2510 = vmatpush1.bf16.msra.mxu0 %v2498
        %2511 = vmatprep.subr.bf16.mxu0 0
        %2512 = vmatpush1.bf16.msra.mxu0 %v2499
        %2513 = vmatprep.subr.bf16.mxu0 0
        %2514 = vmatpush1.bf16.msra.mxu0 %v2500
        %2515 = vmatprep.subr.bf16.mxu0 0
        %2516 = vmatpush1.bf16.msra.mxu0 %v2501
        %2517 = vmatprep.subr.bf16.mxu0 0
        %2518 = vmatpush1.bf16.msra.mxu0 %v2502
        %2519 = vmatprep.subr.bf16.mxu0 0
        %2520 = vmatpush1.bf16.msra.mxu0 %v2503
        %2521 = vmatprep.subr.bf16.mxu0 0
        %2522 = vmatpush1.bf16.msra.mxu0 %v2504
        %2523 = vmatprep.subr.bf16.mxu0 0
        %2524 = vmatpush1.bf16.msra.mxu0 0
        %2525 = vmatprep.subr.bf16.mxu0 0
        %2526 = vmatpush1.bf16.msra.mxu0 0
        %2527 = vmatprep.subr.bf16.mxu0 0
        %2528 = vmatpush1.bf16.msra.mxu0 0
        %2529 = vmatprep.subr.bf16.mxu0 0
        %2530 = vmatpush1.bf16.msra.mxu0 0
        %2531 = vmatprep.subr.bf16.mxu0 0
        %2532 = vmatpush1.bf16.msra.mxu0 0
        %2533 = vmatprep.subr.bf16.mxu0 0
        %2534 = vmatpush1.bf16.msra.mxu0 0
        %2535 = vmatprep.subr.bf16.mxu0 0
        %2536 = vmatpush1.bf16.msra.mxu0 0
        %2537 = vmatprep.subr.bf16.mxu0 0
        %2538 = vmatpush1.bf16.msra.mxu0 0
        %2539 = vmatprep.mubr.bf16.mxu0 0
        %2540 = vmatmul.mubr.bf16.gmra.mrb[0].mxu0 %v2456
        %v2541 = vpop.f32.mrb[0].mxu0
        %v2542 = vadd.f32 0.0, %v2541
        %v2543 = vpop.f32.mrb[0].mxu0
        %v2544 = vpop.f32.mrb[0].mxu0
        %v2545 = vadd.f32 0.0, %v2544
        %v2546 = vpop.f32.mrb[0].mxu0
        %2547 = vdwg.mxu0
        %2548 = vmatprep.subr.bf16.mxu0 0
        %2549 = vmatpush1.bf16.msra.mxu0 %v2457
        %2550 = vmatprep.subr.bf16.mxu0 0
        %2551 = vmatpush1.bf16.msra.mxu0 %v2458
        %2552 = vmatprep.subr.bf16.mxu0 0
        %2553 = vmatpush1.bf16.msra.mxu0 %v2459
        %2554 = vmatprep.subr.bf16.mxu0 0
        %2555 = vmatpush1.bf16.msra.mxu0 %v2460
        %2556 = vmatprep.subr.bf16.mxu0 0
        %2557 = vmatpush1.bf16.msra.mxu0 %v2461
        %2558 = vmatprep.subr.bf16.mxu0 0
        %2559 = vmatpush1.bf16.msra.mxu0 %v2462
        %2560 = vmatprep.subr.bf16.mxu0 0
        %2561 = vmatpush1.bf16.msra.mxu0 %v2463
        %2562 = vmatprep.subr.bf16.mxu0 0
        %2563 = vmatpush1.bf16.msra.mxu0 %v2464
        %2564 = vmatprep.subr.bf16.mxu0 0
        %2565 = vmatpush1.bf16.msra.mxu0 0
        %2566 = vmatprep.subr.bf16.mxu0 0
        %2567 = vmatpush1.bf16.msra.mxu0 0
        %2568 = vmatprep.subr.bf16.mxu0 0
        %2569 = vmatpush1.bf16.msra.mxu0 0
        %2570 = vmatprep.subr.bf16.mxu0 0
        %2571 = vmatpush1.bf16.msra.mxu0 0
        %2572 = vmatprep.subr.bf16.mxu0 0
        %2573 = vmatpush1.bf16.msra.mxu0 0
        %2574 = vmatprep.subr.bf16.mxu0 0
        %2575 = vmatpush1.bf16.msra.mxu0 0
        %2576 = vmatprep.subr.bf16.mxu0 0
        %2577 = vmatpush1.bf16.msra.mxu0 0
        %2578 = vmatprep.subr.bf16.mxu0 0
        %2579 = vmatpush1.bf16.msra.mxu0 0
        %2580 = vmatprep.mubr.bf16.mxu0 0
        %2581 = vmatmul.mubr.bf16.gmra.mrb[0].mxu0 %v2456
        %v2582 = vpop.f32.mrb[0].mxu0
        %v2583 = vadd.f32 %v2542, %v2582
        %v2584 = vpop.f32.mrb[0].mxu0
        %v2585 = vpop.f32.mrb[0].mxu0
        %v2586 = vadd.f32 %v2545, %v2585
        %v2587 = vpop.f32.mrb[0].mxu0
        %2588 = vdwg.mxu0
        %v2589 = vadd.f32 %v2505, %v2583
        %v2590 = vadd.f32 %v2506, %v2586
        %2591 = vst [vmem:[#allocation2] sm:$0xff] %v2589
        %2592 = vst [vmem:[#allocation2 + $0x8] sm:$0xff] %v2590
        // Predicated region
        $region73: #{tpu_custom_call.1} parent=67 // pred_check
          %p2593 = pneg %p304
        $region74: #{tpu_custom_call.1} parent=67 // pred_check_branch
          %2595 = sbr.rel (%p2593) target = $region76
        $region75: #{tpu_custom_call.1} parent=67 // pred_region
          %s2597 = ssub.s32 256, 256
          %2598 = vsyncadd [#allocation3], %s2597
          %s2599 = sshll.u32 [#allocation2], 4
          %s2600 = int_to_ptr.vmem [resolvable:$true] %s2599
          %2605 = dma.vmem_to_hbm [thread:$0]  %s2600, 256, %s12, [#allocation3], 128, 128, 8
        $region76: #{tpu_custom_call.1} parent=67 // pred_fallthru
          _
        // Predicated region
        $region77: #{tpu_custom_call.1} parent=67 // pred_check
          %p2606 = pneg %p304
        $region78: #{tpu_custom_call.1} parent=67 // pred_check_branch
          %2608 = sbr.rel (%p2606) target = $region80
        $region79: #{tpu_custom_call.1} parent=67 // pred_region
          %2609 = dma.done [#allocation3], 256
        $region80: #{tpu_custom_call.1} parent=67 // pred_fallthru
          _
      $region68: #{tpu_custom_call.1} parent=5 // pred_fallthru
        _
      %p2610 = scmp.le.s32.totalorder 2, %s19
      // Predicated region
      $region81: #{tpu_custom_call.1} parent=5 // pred_check
        %p2611 = pneg %p2610
      $region82: #{tpu_custom_call.1} parent=5 // pred_check_branch
        %2613 = sbr.rel (%p2611) target = $region84
      $region83: #{tpu_custom_call.1} parent=5 // pred_region
        %s2614 = ssub.s32 %s19, 2
      $region84: #{tpu_custom_call.1} parent=5 // pred_fallthru
        _
    $region6: #{tpu_custom_call.1} parent=1 // loop_footer
      %s23 = sadd.s32 1, %s19
    $region7: #{tpu_custom_call.1} parent=1 // loop_footer_branch
      %18 = sbr.rel target = $region3
    $region8: #{tpu_custom_call.1} parent=1 // loop_exit
      _
    %2615 = vsyncpa [#allocation3], 1
    %s2616 = scalar_lea.sflag [#allocation3], 1
    %2617 = vsyncpa %s2616, 1

</llo_original>
